<compile_context>
chip_gen: v5e
topology: v5e:2x2
jax: 0.10.0
libtpu: 0.0.40
codegen_flags: <defaults>
</compile_context>

<pallas_src>
import functools

import jax
import jax.numpy as jnp
from jax.experimental import pallas as pl
from jax.experimental.pallas import tpu as pltpu


def _unet_output_kernel(x_ref, gamma_ref, beta_ref, gmat_ref, w_ref, b_ref,
                        o_ref, *, H, W, eps):
    """GroupNorm(32) -> SiLU -> Conv2d(3x3, pad=1); one batch element per grid step.

    x_ref     : (1, C_in, H*W)      flattened NCHW input slab (lane-dense)
    gamma_ref : (C_in, 1)           GroupNorm scale
    beta_ref  : (C_in, 1)           GroupNorm shift
    gmat_ref  : (C_in, C_in)        group-averaging matrix (1/(cg*H*W) within a group)
    w_ref     : (3, C_out, 3*C_in)  conv weight, bf16, [kh, o, kw*C_in + c]
    b_ref     : (C_out, 1)          conv bias
    o_ref     : (1, C_out, H*W)     flattened output slab
    """
    C_in = x_ref.shape[1]
    HW = x_ref.shape[2]

    x = x_ref[0].astype(jnp.float32)                           # (C_in, HW)

    # ---- GroupNorm(32): per-channel lane reductions -> per-group stats via a tiny
    # matmul with the group-averaging matrix (no sublane reshapes in-kernel). --------
    ch_sum = jnp.sum(x, axis=1, keepdims=True)                 # (C_in, 1)
    ch_sqs = jnp.sum(x * x, axis=1, keepdims=True)             # (C_in, 1)
    gmat = gmat_ref[...]
    mean_c = jnp.dot(gmat, ch_sum, preferred_element_type=jnp.float32)
    ex2_c = jnp.dot(gmat, ch_sqs, preferred_element_type=jnp.float32)
    inv_c = jax.lax.rsqrt(ex2_c - mean_c * mean_c + eps)
    # Fold the affine: y = x * scale_c + shift_c  (2 slab-sized VPU ops instead of 4).
    scale_c = inv_c * gamma_ref[...]
    shift_c = beta_ref[...] - mean_c * scale_c
    y = x * scale_c + shift_c                                  # (C_in, HW) f32

    # ---- SiLU: y * 1/(1+exp(-y)); exp and approx reciprocal both run on the EUP. ---
    y = y * pl.reciprocal(1.0 + jnp.exp(-y), approx=True)

    # ---- Conv2d 3x3 pad=1 on the flattened lane axis --------------------------------
    pos = jax.lax.broadcasted_iota(jnp.int32, (1, HW), 1)      # flat output position
    col = pos % W                                              # output column index

    # dx shifts (XLU roll) + input-side column-edge masks, shared by all three dy's.
    ym = jnp.where(col != 0, pltpu.roll(y, shift=1, axis=1), 0.0)           # y[h, w-1]
    yp = jnp.where(col != W - 1, pltpu.roll(y, shift=HW - 1, axis=1), 0.0)  # y[h, w+1]
    y3 = jnp.concatenate([ym, y, yp], axis=0)                  # (3*C_in, HW) f32

    # dy = 0 (kh = 1): always row-valid.
    acc = jnp.dot(w_ref[1], y3.astype(jnp.bfloat16),
                  preferred_element_type=jnp.float32)
    # dy = -1 (kh = 0): sources row h-1; invalid for output row h == 0 (mask output).
    top = jnp.dot(w_ref[0],
                  pltpu.roll(y3, shift=W, axis=1).astype(jnp.bfloat16),
                  preferred_element_type=jnp.float32)
    acc = acc + jnp.where(pos >= W, top, 0.0)
    # dy = +1 (kh = 2): sources row h+1; invalid for output row h == H-1 (mask output).
    bot = jnp.dot(w_ref[2],
                  pltpu.roll(y3, shift=HW - W, axis=1).astype(jnp.bfloat16),
                  preferred_element_type=jnp.float32)
    acc = acc + jnp.where(pos < (H - 1) * W, bot, 0.0)

    acc = acc + b_ref[...]
    o_ref[0] = acc.astype(o_ref.dtype)


def unet_output_forward(x, gamma, beta, weight, bias, *, num_groups=32, eps=1e-5):
    """Pallas implementation of UNET_Output.forward on an NCHW tensor."""
    B, C_in, H, W = x.shape
    C_out = weight.shape[0]
    HW = H * W
    assert C_in % num_groups == 0, "GroupNorm requires C_in % num_groups == 0"
    assert HW % 128 == 0, "flattened spatial size must be a multiple of 128 lanes"
    cg = C_in // num_groups

    # Group-averaging matrix: gmat[i,j] = 1/(cg*H*W) if channels i,j share a group.
    gid = jnp.arange(C_in) // cg
    gmat = (gid[:, None] == gid[None, :]).astype(jnp.float32) / float(cg * HW)

    # Lane-dense slabs (wrapper-side layout plumbing).
    x_flat = x.reshape(B, C_in, HW)
    gamma2 = gamma.reshape(C_in, 1).astype(jnp.float32)
    beta2 = beta.reshape(C_in, 1).astype(jnp.float32)
    # (C_out, C_in, 3, 3) -> (3, C_out, 3*C_in) bf16; K ordered [dx=-1 | dx=0 | dx=+1]
    # to match the in-kernel concat([y(w-1), y, y(w+1)]) stack.
    w_stack = jnp.transpose(
        jnp.transpose(weight, (2, 3, 1, 0)).reshape(3, 3 * C_in, C_out),
        (0, 2, 1)).astype(jnp.bfloat16)
    b2 = bias.reshape(C_out, 1).astype(jnp.float32)

    kernel = functools.partial(_unet_output_kernel, H=H, W=W, eps=eps)

    # Explicit scoped-VMEM budget: double-buffered in/out blocks + params + temporaries.
    itemsize = jnp.dtype(x.dtype).itemsize
    in_block = C_in * HW * itemsize
    out_block = C_out * HW * itemsize
    params = 4 * (gmat.size + gamma2.size + beta2.size + b2.size) + 2 * w_stack.size
    temps = 4 * (6 * C_in * HW + 2 * 3 * C_in * HW + 4 * C_out * HW)
    vmem_bytes = int(min(2 * (in_block + out_block) + 2 * params + temps + (4 << 20),
                         100 << 20))

    flops = B * (2 * 9 * C_out * C_in * HW + 10 * C_in * HW)
    bytes_accessed = int(itemsize * (x_flat.size + B * C_out * HW) + params)

    out_flat = pl.pallas_call(
        kernel,
        out_shape=jax.ShapeDtypeStruct((B, C_out, HW), x.dtype),
        grid=(B,),
        in_specs=[
            pl.BlockSpec((1, C_in, HW), lambda b: (b, 0, 0)),
            pl.BlockSpec((C_in, 1), lambda b: (0, 0)),
            pl.BlockSpec((C_in, 1), lambda b: (0, 0)),
            pl.BlockSpec((C_in, C_in), lambda b: (0, 0)),
            pl.BlockSpec((3, C_out, 3 * C_in), lambda b: (0, 0, 0)),
            pl.BlockSpec((C_out, 1), lambda b: (0, 0)),
        ],
        out_specs=pl.BlockSpec((1, C_out, HW), lambda b: (b, 0, 0)),
        compiler_params=pltpu.CompilerParams(
            dimension_semantics=("parallel",),   # v7x: batch sharded over the 2 TCs
            vmem_limit_bytes=vmem_bytes,
        ),
        cost_estimate=pl.CostEstimate(
            flops=flops,
            transcendentals=2 * B * C_in * HW,
            bytes_accessed=bytes_accessed,
        ),
    )(x_flat, gamma2, beta2, gmat, w_stack, b2)
    return out_flat.reshape(B, C_out, H, W)


def unet_output_reference(x, gamma, beta, weight, bias, *, num_groups=32, eps=1e-5):
    """Pure-JAX reference mirroring PyTorch GroupNorm -> SiLU -> Conv2d(3,pad=1)."""
    B, C, H, W = x.shape
    C_out = weight.shape[0]
    xg = x.reshape(B, num_groups, (C // num_groups) * H * W)
    mean = xg.mean(axis=2, keepdims=True)
    var = xg.var(axis=2, keepdims=True)
    xn = ((xg - mean) * jax.lax.rsqrt(var + eps)).reshape(B, C, H, W)
    y = xn * gamma[None, :, None, None] + beta[None, :, None, None]
    y = y * jax.nn.sigmoid(y)
    yp = jnp.pad(y, ((0, 0), (0, 0), (1, 1), (1, 1)))
    out = jnp.zeros((B, C_out, H, W), jnp.float32)
    for kh in range(3):
        for kw in range(3):
            out = out + jnp.einsum("oc,bchw->bohw", weight[:, :, kh, kw],
                                   yp[:, :, kh:kh + H, kw:kw + W])
    return out + bias[None, :, None, None]


if __name__ == "__main__":
    key = jax.random.PRNGKey(0)
    kx, kg, kb, kw, kc = jax.random.split(key, 5)

    # GroupNorm(32, C_in) requires C_in % 32 == 0; use 64 -> 32 groups of 2 channels.
    B, C_in, C_out, H, W = 2, 64, 4, 16, 16
    x = jax.random.normal(kx, (B, C_in, H, W), dtype=jnp.float32)
    gamma = 1.0 + 0.1 * jax.random.normal(kg, (C_in,), dtype=jnp.float32)
    beta = 0.1 * jax.random.normal(kb, (C_in,), dtype=jnp.float32)
    weight = jax.random.normal(kw, (C_out, C_in, 3, 3), dtype=jnp.float32) / jnp.sqrt(9.0 * C_in)
    bias = 0.1 * jax.random.normal(kc, (C_out,), dtype=jnp.float32)

    y = unet_output_forward(x, gamma, beta, weight, bias)
    y = jax.block_until_ready(y)

    y_ref = unet_output_reference(x, gamma, beta, weight, bias)
    assert y.shape == (B, C_out, H, W) and y.dtype == x.dtype
    max_err = float(jnp.max(jnp.abs(y - y_ref)))
    assert max_err < 2e-2, f"max abs error vs reference: {max_err}"
    print("KERNEL_OK")
</pallas_src>

<mosaic_0001>
module attributes {stable_mosaic.version = 11 : i64} {
  func.func @_unet_output_kernel(%arg0: i32, %arg1: memref<1x64x256xf32, #tpu.memory_space<vmem>>, %arg2: memref<64x1xf32, #tpu.memory_space<vmem>>, %arg3: memref<64x1xf32, #tpu.memory_space<vmem>>, %arg4: memref<64x64xf32, #tpu.memory_space<vmem>>, %arg5: memref<3x4x192xbf16, #tpu.memory_space<vmem>>, %arg6: memref<4x1xf32, #tpu.memory_space<vmem>>, %arg7: memref<1x4x256xf32, #tpu.memory_space<vmem>>) attributes {dimension_semantics = [#tpu.dimension_semantics<parallel>], iteration_bounds = array<i64: 2>, scalar_prefetch = 0 : i64, scratch_operands = 0 : i64, tpu.core_type = #tpu.core_type<tc>, window_params = [{transform_indices = @transform_0, window_bounds = array<i64: 1, 64, 256>}, {pipeline_mode = #tpu.pipeline_mode<synchronous>, transform_indices = @transform_1, window_bounds = array<i64: 64, 1>}, {pipeline_mode = #tpu.pipeline_mode<synchronous>, transform_indices = @transform_2, window_bounds = array<i64: 64, 1>}, {pipeline_mode = #tpu.pipeline_mode<synchronous>, transform_indices = @transform_3, window_bounds = array<i64: 64, 64>}, {pipeline_mode = #tpu.pipeline_mode<synchronous>, transform_indices = @transform_4, window_bounds = array<i64: 3, 4, 192>}, {pipeline_mode = #tpu.pipeline_mode<synchronous>, transform_indices = @transform_5, window_bounds = array<i64: 4, 1>}, {transform_indices = @transform_6, window_bounds = array<i64: 1, 4, 256>}]} {
    %c0 = arith.constant 0 : index
    %c0_0 = arith.constant 0 : index
    %c0_1 = arith.constant 0 : index
    %0 = vector.load %arg1[%c0, %c0_0, %c0_1] : memref<1x64x256xf32, #tpu.memory_space<vmem>>, vector<1x64x256xf32>
    %1 = vector.shape_cast %0 : vector<1x64x256xf32> to vector<64x256xf32>
    %cst = arith.constant dense<0.000000e+00> : vector<64xf32>
    %2 = vector.multi_reduction <add>, %1, %cst [1] : vector<64x256xf32> to vector<64xf32>
    %3 = vector.shape_cast %2 : vector<64xf32> to vector<64x1xf32>
    %4 = arith.mulf %1, %1 : vector<64x256xf32>
    %cst_2 = arith.constant dense<0.000000e+00> : vector<64xf32>
    %5 = vector.multi_reduction <add>, %4, %cst_2 [1] : vector<64x256xf32> to vector<64xf32>
    %6 = vector.shape_cast %5 : vector<64xf32> to vector<64x1xf32>
    %c0_3 = arith.constant 0 : index
    %c0_4 = arith.constant 0 : index
    %7 = vector.load %arg4[%c0_3, %c0_4] : memref<64x64xf32, #tpu.memory_space<vmem>>, vector<64x64xf32>
    %cst_5 = arith.constant dense<0.000000e+00> : vector<64x1xf32>
    %8 = tpu.matmul %7, %3, %cst_5 {dimension_numbers = #tpu.dot_dimension_numbers<[1], [0], [0], [1], [0, 0, 1, 1], [], []>} : vector<64x64xf32>, vector<64x1xf32>, vector<64x1xf32> -> vector<64x1xf32>
    %cst_6 = arith.constant dense<0.000000e+00> : vector<64x1xf32>
    %9 = tpu.matmul %7, %6, %cst_6 {dimension_numbers = #tpu.dot_dimension_numbers<[1], [0], [0], [1], [0, 0, 1, 1], [], []>} : vector<64x64xf32>, vector<64x1xf32>, vector<64x1xf32> -> vector<64x1xf32>
    %10 = arith.mulf %8, %8 : vector<64x1xf32>
    %11 = arith.subf %9, %10 : vector<64x1xf32>
    %cst_7 = arith.constant 9.99999974E-6 : f32
    %12 = vector.broadcast %cst_7 : f32 to vector<64x1xf32>
    %13 = arith.addf %11, %12 : vector<64x1xf32>
    %14 = math.rsqrt %13 : vector<64x1xf32>
    %c0_8 = arith.constant 0 : index
    %c0_9 = arith.constant 0 : index
    %15 = vector.load %arg2[%c0_8, %c0_9] : memref<64x1xf32, #tpu.memory_space<vmem>>, vector<64x1xf32>
    %16 = arith.mulf %14, %15 : vector<64x1xf32>
    %c0_10 = arith.constant 0 : index
    %c0_11 = arith.constant 0 : index
    %17 = vector.load %arg3[%c0_10, %c0_11] : memref<64x1xf32, #tpu.memory_space<vmem>>, vector<64x1xf32>
    %18 = arith.mulf %8, %16 : vector<64x1xf32>
    %19 = arith.subf %17, %18 : vector<64x1xf32>
    %20 = vector.broadcast %16 : vector<64x1xf32> to vector<64x256xf32>
    %21 = arith.mulf %1, %20 : vector<64x256xf32>
    %22 = vector.broadcast %19 : vector<64x1xf32> to vector<64x256xf32>
    %23 = arith.addf %21, %22 : vector<64x256xf32>
    %cst_12 = arith.constant 0.000000e+00 : f32
    %24 = vector.broadcast %cst_12 : f32 to vector<64x256xf32>
    %25 = arith.subf %24, %23 : vector<64x256xf32>
    %26 = math.exp %25 : vector<64x256xf32>
    %cst_13 = arith.constant 1.000000e+00 : f32
    %27 = vector.broadcast %cst_13 : f32 to vector<64x256xf32>
    %28 = arith.addf %27, %26 : vector<64x256xf32>
    %29 = tpu.reciprocal %28 {approx = true} : vector<64x256xf32> -> vector<64x256xf32>
    %30 = arith.mulf %23, %29 : vector<64x256xf32>
    %31 = tpu.iota {dimensions = array<i32: 1>} : vector<1x256xi32>
    %c16_i32 = arith.constant 16 : i32
    %c0_i32 = arith.constant 0 : i32
    %32 = arith.cmpi eq, %c16_i32, %c0_i32 : i32
    %c1_i32 = arith.constant 1 : i32
    %33 = arith.select %32, %c1_i32, %c16_i32 : i32
    %34 = vector.broadcast %33 : i32 to vector<1x256xi32>
    %35 = arith.remsi %31, %34 : vector<1x256xi32>
    %c0_i32_14 = arith.constant 0 : i32
    %36 = vector.broadcast %c0_i32_14 : i32 to vector<1x256xi32>
    %37 = arith.cmpi ne, %35, %36 : vector<1x256xi32>
    %c0_i32_15 = arith.constant 0 : i32
    %38 = vector.broadcast %c0_i32_15 : i32 to vector<1x256xi32>
    %39 = arith.cmpi slt, %35, %38 : vector<1x256xi32>
    %c0_i32_16 = arith.constant 0 : i32
    %40 = arith.cmpi slt, %33, %c0_i32_16 : i32
    %41 = vector.broadcast %40 : i1 to vector<1x256xi1>
    %42 = vector.broadcast %41 : vector<1x256xi1> to vector<1x256xi1>
    %43 = arith.xori %39, %42 : vector<1x256xi1>
    %44 = arith.andi %43, %37 : vector<1x256xi1>
    %45 = vector.broadcast %33 : i32 to vector<1x256xi32>
    %46 = arith.addi %35, %45 : vector<1x256xi32>
    %47 = arith.select %44, %46, %35 : vector<1x256xi1>, vector<1x256xi32>
    %c0_i32_17 = arith.constant 0 : i32
    %48 = vector.broadcast %c0_i32_17 : i32 to vector<1x256xi32>
    %49 = arith.cmpi ne, %47, %48 : vector<1x256xi32>
    %c1_i32_18 = arith.constant 1 : i32
    %50 = tpu.dynamic_rotate %30 by %c1_i32_18 dim 1 : vector<64x256xf32>, i32 -> vector<64x256xf32>
    %cst_19 = arith.constant 0.000000e+00 : f32
    %51 = vector.shape_cast %49 : vector<1x256xi1> to vector<1x256xi1>
    %52 = vector.broadcast %51 : vector<1x256xi1> to vector<64x256xi1>
    %53 = vector.broadcast %cst_19 : f32 to vector<64x256xf32>
    %54 = arith.select %52, %50, %53 : vector<64x256xi1>, vector<64x256xf32>
    %c15_i32 = arith.constant 15 : i32
    %55 = vector.broadcast %c15_i32 : i32 to vector<1x256xi32>
    %56 = arith.cmpi ne, %47, %55 : vector<1x256xi32>
    %c255_i32 = arith.constant 255 : i32
    %57 = tpu.dynamic_rotate %30 by %c255_i32 dim 1 : vector<64x256xf32>, i32 -> vector<64x256xf32>
    %cst_20 = arith.constant 0.000000e+00 : f32
    %58 = vector.shape_cast %56 : vector<1x256xi1> to vector<1x256xi1>
    %59 = vector.broadcast %58 : vector<1x256xi1> to vector<64x256xi1>
    %60 = vector.broadcast %cst_20 : f32 to vector<64x256xf32>
    %61 = arith.select %59, %57, %60 : vector<64x256xi1>, vector<64x256xf32>
    %62 = tpu.concatenate %54, %30, %61 in 0 : vector<64x256xf32>, vector<64x256xf32>, vector<64x256xf32> -> vector<192x256xf32>
    %c1 = arith.constant 1 : index
    %c0_21 = arith.constant 0 : index
    %c0_22 = arith.constant 0 : index
    %63 = vector.load %arg5[%c1, %c0_21, %c0_22] : memref<3x4x192xbf16, #tpu.memory_space<vmem>>, vector<1x4x192xbf16>
    %64 = vector.shape_cast %63 : vector<1x4x192xbf16> to vector<4x192xbf16>
    %65 = arith.truncf %62 : vector<192x256xf32> to vector<192x256xbf16>
    %cst_23 = arith.constant dense<0.000000e+00> : vector<4x256xf32>
    %66 = tpu.matmul %64, %65, %cst_23 {dimension_numbers = #tpu.dot_dimension_numbers<[1], [0], [0], [1], [0, 0, 1, 1], [], []>} : vector<4x192xbf16>, vector<192x256xbf16>, vector<4x256xf32> -> vector<4x256xf32>
    %c0_24 = arith.constant 0 : index
    %c0_25 = arith.constant 0 : index
    %c0_26 = arith.constant 0 : index
    %67 = vector.load %arg5[%c0_24, %c0_25, %c0_26] : memref<3x4x192xbf16, #tpu.memory_space<vmem>>, vector<1x4x192xbf16>
    %68 = vector.shape_cast %67 : vector<1x4x192xbf16> to vector<4x192xbf16>
    %c16_i32_27 = arith.constant 16 : i32
    %69 = tpu.dynamic_rotate %62 by %c16_i32_27 dim 1 : vector<192x256xf32>, i32 -> vector<192x256xf32>
    %70 = arith.truncf %69 : vector<192x256xf32> to vector<192x256xbf16>
    %cst_28 = arith.constant dense<0.000000e+00> : vector<4x256xf32>
    %71 = tpu.matmul %68, %70, %cst_28 {dimension_numbers = #tpu.dot_dimension_numbers<[1], [0], [0], [1], [0, 0, 1, 1], [], []>} : vector<4x192xbf16>, vector<192x256xbf16>, vector<4x256xf32> -> vector<4x256xf32>
    %c16_i32_29 = arith.constant 16 : i32
    %72 = vector.broadcast %c16_i32_29 : i32 to vector<1x256xi32>
    %73 = arith.cmpi sge, %31, %72 : vector<1x256xi32>
    %cst_30 = arith.constant 0.000000e+00 : f32
    %74 = vector.shape_cast %73 : vector<1x256xi1> to vector<1x256xi1>
    %75 = vector.broadcast %74 : vector<1x256xi1> to vector<4x256xi1>
    %76 = vector.broadcast %cst_30 : f32 to vector<4x256xf32>
    %77 = arith.select %75, %71, %76 : vector<4x256xi1>, vector<4x256xf32>
    %78 = arith.addf %66, %77 : vector<4x256xf32>
    %c2 = arith.constant 2 : index
    %c0_31 = arith.constant 0 : index
    %c0_32 = arith.constant 0 : index
    %79 = vector.load %arg5[%c2, %c0_31, %c0_32] : memref<3x4x192xbf16, #tpu.memory_space<vmem>>, vector<1x4x192xbf16>
    %80 = vector.shape_cast %79 : vector<1x4x192xbf16> to vector<4x192xbf16>
    %c240_i32 = arith.constant 240 : i32
    %81 = tpu.dynamic_rotate %62 by %c240_i32 dim 1 : vector<192x256xf32>, i32 -> vector<192x256xf32>
    %82 = arith.truncf %81 : vector<192x256xf32> to vector<192x256xbf16>
    %cst_33 = arith.constant dense<0.000000e+00> : vector<4x256xf32>
    %83 = tpu.matmul %80, %82, %cst_33 {dimension_numbers = #tpu.dot_dimension_numbers<[1], [0], [0], [1], [0, 0, 1, 1], [], []>} : vector<4x192xbf16>, vector<192x256xbf16>, vector<4x256xf32> -> vector<4x256xf32>
    %c240_i32_34 = arith.constant 240 : i32
    %84 = vector.broadcast %c240_i32_34 : i32 to vector<1x256xi32>
    %85 = arith.cmpi slt, %31, %84 : vector<1x256xi32>
    %cst_35 = arith.constant 0.000000e+00 : f32
    %86 = vector.shape_cast %85 : vector<1x256xi1> to vector<1x256xi1>
    %87 = vector.broadcast %86 : vector<1x256xi1> to vector<4x256xi1>
    %88 = vector.broadcast %cst_35 : f32 to vector<4x256xf32>
    %89 = arith.select %87, %83, %88 : vector<4x256xi1>, vector<4x256xf32>
    %90 = arith.addf %78, %89 : vector<4x256xf32>
    %c0_36 = arith.constant 0 : index
    %c0_37 = arith.constant 0 : index
    %91 = vector.load %arg6[%c0_36, %c0_37] : memref<4x1xf32, #tpu.memory_space<vmem>>, vector<4x1xf32>
    %92 = vector.broadcast %91 : vector<4x1xf32> to vector<4x256xf32>
    %93 = arith.addf %90, %92 : vector<4x256xf32>
    %c0_38 = arith.constant 0 : index
    %c0_39 = arith.constant 0 : index
    %c0_40 = arith.constant 0 : index
    %94 = vector.load %arg7[%c0_38, %c0_39, %c0_40] : memref<1x4x256xf32, #tpu.memory_space<vmem>>, vector<1x4x256xf32>
    %95 = vector.shape_cast %94 : vector<1x4x256xf32> to vector<4x256xf32>
    %96 = vector.shape_cast %93 : vector<4x256xf32> to vector<1x4x256xf32>
    tpu.vector_store %arg7[%c0_38, %c0_39, %c0_40], %96 {strides = array<i32>} : memref<1x4x256xf32, #tpu.memory_space<vmem>>, vector<1x4x256xf32>,
    return
  }
  func.func @transform_0(%arg0: i32) -> (i32, i32, i32) {
    %c0_i32 = arith.constant 0 : i32
    %c0_i32_0 = arith.constant 0 : i32
    %c0_i32_1 = arith.constant 0 : i32
    return %arg0, %c0_i32, %c0_i32_0 : i32, i32, i32
  }
  func.func @transform_1(%arg0: i32) -> (i32, i32) {
    %c0_i32 = arith.constant 0 : i32
    %c0_i32_0 = arith.constant 0 : i32
    %c0_i32_1 = arith.constant 0 : i32
    return %c0_i32, %c0_i32_0 : i32, i32
  }
  func.func @transform_2(%arg0: i32) -> (i32, i32) {
    %c0_i32 = arith.constant 0 : i32
    %c0_i32_0 = arith.constant 0 : i32
    %c0_i32_1 = arith.constant 0 : i32
    return %c0_i32, %c0_i32_0 : i32, i32
  }
  func.func @transform_3(%arg0: i32) -> (i32, i32) {
    %c0_i32 = arith.constant 0 : i32
    %c0_i32_0 = arith.constant 0 : i32
    %c0_i32_1 = arith.constant 0 : i32
    return %c0_i32, %c0_i32_0 : i32, i32
  }
  func.func @transform_4(%arg0: i32) -> (i32, i32, i32) {
    %c0_i32 = arith.constant 0 : i32
    %c0_i32_0 = arith.constant 0 : i32
    %c0_i32_1 = arith.constant 0 : i32
    %c0_i32_2 = arith.constant 0 : i32
    return %c0_i32, %c0_i32_0, %c0_i32_1 : i32, i32, i32
  }
  func.func @transform_5(%arg0: i32) -> (i32, i32) {
    %c0_i32 = arith.constant 0 : i32
    %c0_i32_0 = arith.constant 0 : i32
    %c0_i32_1 = arith.constant 0 : i32
    return %c0_i32, %c0_i32_0 : i32, i32
  }
  func.func @transform_6(%arg0: i32) -> (i32, i32, i32) {
    %c0_i32 = arith.constant 0 : i32
    %c0_i32_0 = arith.constant 0 : i32
    %c0_i32_1 = arith.constant 0 : i32
    return %arg0, %c0_i32, %c0_i32_0 : i32, i32, i32
  }
}

</mosaic_0001>

<llo_original>
// kernel: tpu_custom_call.1
$region0: #{tpu_custom_call.1}
  #allocation0 [shape = 'u32[]', space=smem, size = 0x4, offset = 0x4, fixed_abs, tag = 'smem constant byte address 0x4 - core index']
  #allocation1 [shape = 'u32[72,128]{1,0:T(1,128)}', space=vmem, size = 0x9000, scoped, tag = 'internal scratch']
  %s0 = inlined_call_operand.hbm [shape: f32[2,64,256], index: 0, kind: input, shape index: {}]
  %s1 = inlined_call_operand.vmem [shape: f32[64,1], index: 1, kind: input, shape index: {}]
  %s2 = inlined_call_operand.vmem [shape: f32[64,1], index: 2, kind: input, shape index: {}]
  %s3 = inlined_call_operand.vmem [shape: f32[64,64], index: 3, kind: input, shape index: {}]
  %s4 = inlined_call_operand.vmem [shape: bf16[3,4,192], index: 4, kind: input, shape index: {}]
  %s5 = inlined_call_operand.vmem [shape: f32[4,1], index: 5, kind: input, shape index: {}]
  %s6 = inlined_call_operand.hbm [shape: f32[2,4,256], index: 6, kind: output, shape index: {}]
  %s7 = sld [smem:[#allocation0]]
  $region61: #{tpu_custom_call.1} parent=0
    _
  %s9 = ssub.s32 1, %s7
  %s10 = scalar_select 0, %s9, %s7
  $region1: #{tpu_custom_call.1} parent=0
    #allocation2 [shape = 'u8[131072]{0}', space=vmem, size = 0x20000, scoped, tag = 'input window, operand 0']
    #allocation3 [shape = 's32[2]{0}', space=sflag, size = 0x8, scoped, tag = 'scoped memory for tpu_custom_call.1']
    #allocation4 [shape = 's32[2]{0}', space=sflag, size = 0x8, scoped, tag = 'scoped memory for tpu_custom_call.1']
    #allocation5 [shape = 'u8[8192]{0}', space=vmem, size = 0x2000, scoped, tag = 'output window, operand 0']
    %11 = vsyncpa [#allocation3], 0
    %s12 = scalar_lea.sflag [#allocation3], 1
    %13 = vsyncpa %s12, 0
    %14 = vsyncpa [#allocation4], 0
    %s15 = scalar_lea.sflag [#allocation4], 1
    %16 = vsyncpa %s15, 0
    loop: start=0, step=1, limit=4
    $region2: #{tpu_custom_call.1} parent=1 // loop_pre_header
      _
    $region3: #{tpu_custom_call.1} parent=1 // loop_header
      %s18 = sphi 0, %s22
      %p19 = scmp.ge.s32.totalorder %s18, 4
      %s28 = sphi 0, %s30
      %s31 = sphi 0, %s28
      %s32 = sphi 0, %s31
      %s48 = sphi 0, %s32
      %s52 = sphi 0, %s52
      %s54 = sphi 0, %s52
      %s55 = sphi 0, %s54
      %s69 = sphi 0, %s55
      %s73 = sphi 0, %s73
      %s75 = sphi 0, %s73
      %s76 = sphi 0, %s75
      %s90 = sphi 0, %s76
      %s94 = sphi 0, %s94
      %s96 = sphi 0, %s94
      %s97 = sphi 0, %s96
      %s111 = sphi 0, %s97
      %s115 = sphi 0, %s115
      %s117 = sphi 0, %s115
      %s118 = sphi 0, %s117
      %s132 = sphi 0, %s118
      %s136 = sphi 0, %s136
      %s138 = sphi 0, %s136
      %s139 = sphi 0, %s138
      %s153 = sphi 0, %s139
      %s159 = sphi 0, %s161
      %s162 = sphi 0, %s159
      %s163 = sphi 0, %s162
      %s179 = sphi 0, %s163
    $region4: #{tpu_custom_call.1} parent=1 // loop_header_branch
      %21 = sbr.rel (%p19) target = $region8
    $region5: #{tpu_custom_call.1} parent=1 // loop_body
      %s23 = ssub.s32 %s18, 1
      %s24 = ssub.s32 %s18, 2
      %s25 = sadd.s32 %s18, 1
      %s26 = ssub.s32 %s18, %s25
      %p27 = scmp.eq.s32.totalorder %s26, 0
      %s29 = sadd.s32 %s28, 1
      %s30 = scalar_select %p27, %s28, %s29
      %p33 = pneg %p27
      %p34 = scmp.eq.s32.totalorder %s18, 1
      %p35 = por %p33, %p34
      %p36 = scmp.ne.s32.totalorder %s28, %s31
      %p37 = scmp.eq.s32.totalorder %s18, 0
      %p38 = por %p36, %p37
      %p39 = scmp.ne.s32.totalorder %s28, %s31
      %p40 = scmp.eq.s32.totalorder %s23, 1
      %p41 = por %p39, %p40
      %p42 = scmp.ne.s32.totalorder %s31, %s32
      %p43 = scmp.eq.s32.totalorder %s23, 0
      %p44 = por %p42, %p43
      %p45 = scmp.ne.s32.totalorder %s31, %s32
      %p46 = scmp.eq.s32.totalorder %s24, 1
      %p47 = por %p45, %p46
      %p49 = scmp.ne.s32.totalorder %s32, %s48
      %p50 = scmp.eq.s32.totalorder %s24, 0
      %p51 = por %p49, %p50
      %s53 = sadd.s32 %s52, 1
      %p56 = scmp.eq.s32.totalorder %s18, 1
      %p57 = scmp.ne.s32.totalorder %s52, %s54
      %p58 = scmp.eq.s32.totalorder %s18, 0
      %p59 = por %p57, %p58
      %p60 = scmp.ne.s32.totalorder %s52, %s54
      %p61 = scmp.eq.s32.totalorder %s23, 1
      %p62 = por %p60, %p61
      %p63 = scmp.ne.s32.totalorder %s54, %s55
      %p64 = scmp.eq.s32.totalorder %s23, 0
      %p65 = por %p63, %p64
      %p66 = scmp.ne.s32.totalorder %s54, %s55
      %p67 = scmp.eq.s32.totalorder %s24, 1
      %p68 = por %p66, %p67
      %p70 = scmp.ne.s32.totalorder %s55, %s69
      %p71 = scmp.eq.s32.totalorder %s24, 0
      %p72 = por %p70, %p71
      %s74 = sadd.s32 %s73, 1
      %p77 = scmp.eq.s32.totalorder %s18, 1
      %p78 = scmp.ne.s32.totalorder %s73, %s75
      %p79 = scmp.eq.s32.totalorder %s18, 0
      %p80 = por %p78, %p79
      %p81 = scmp.ne.s32.totalorder %s73, %s75
      %p82 = scmp.eq.s32.totalorder %s23, 1
      %p83 = por %p81, %p82
      %p84 = scmp.ne.s32.totalorder %s75, %s76
      %p85 = scmp.eq.s32.totalorder %s23, 0
      %p86 = por %p84, %p85
      %p87 = scmp.ne.s32.totalorder %s75, %s76
      %p88 = scmp.eq.s32.totalorder %s24, 1
      %p89 = por %p87, %p88
      %p91 = scmp.ne.s32.totalorder %s76, %s90
      %p92 = scmp.eq.s32.totalorder %s24, 0
      %p93 = por %p91, %p92
      %s95 = sadd.s32 %s94, 1
      %p98 = scmp.eq.s32.totalorder %s18, 1
      %p99 = scmp.ne.s32.totalorder %s94, %s96
      %p100 = scmp.eq.s32.totalorder %s18, 0
      %p101 = por %p99, %p100
      %p102 = scmp.ne.s32.totalorder %s94, %s96
      %p103 = scmp.eq.s32.totalorder %s23, 1
      %p104 = por %p102, %p103
      %p105 = scmp.ne.s32.totalorder %s96, %s97
      %p106 = scmp.eq.s32.totalorder %s23, 0
      %p107 = por %p105, %p106
      %p108 = scmp.ne.s32.totalorder %s96, %s97
      %p109 = scmp.eq.s32.totalorder %s24, 1
      %p110 = por %p108, %p109
      %p112 = scmp.ne.s32.totalorder %s97, %s111
      %p113 = scmp.eq.s32.totalorder %s24, 0
      %p114 = por %p112, %p113
      %s116 = sadd.s32 %s115, 1
      %p119 = scmp.eq.s32.totalorder %s18, 1
      %p120 = scmp.ne.s32.totalorder %s115, %s117
      %p121 = scmp.eq.s32.totalorder %s18, 0
      %p122 = por %p120, %p121
      %p123 = scmp.ne.s32.totalorder %s115, %s117
      %p124 = scmp.eq.s32.totalorder %s23, 1
      %p125 = por %p123, %p124
      %p126 = scmp.ne.s32.totalorder %s117, %s118
      %p127 = scmp.eq.s32.totalorder %s23, 0
      %p128 = por %p126, %p127
      %p129 = scmp.ne.s32.totalorder %s117, %s118
      %p130 = scmp.eq.s32.totalorder %s24, 1
      %p131 = por %p129, %p130
      %p133 = scmp.ne.s32.totalorder %s118, %s132
      %p134 = scmp.eq.s32.totalorder %s24, 0
      %p135 = por %p133, %p134
      %s137 = sadd.s32 %s136, 1
      %p140 = scmp.eq.s32.totalorder %s18, 1
      %p141 = scmp.ne.s32.totalorder %s136, %s138
      %p142 = scmp.eq.s32.totalorder %s18, 0
      %p143 = por %p141, %p142
      %p144 = scmp.ne.s32.totalorder %s136, %s138
      %p145 = scmp.eq.s32.totalorder %s23, 1
      %p146 = por %p144, %p145
      %p147 = scmp.ne.s32.totalorder %s138, %s139
      %p148 = scmp.eq.s32.totalorder %s23, 0
      %p149 = por %p147, %p148
      %p150 = scmp.ne.s32.totalorder %s138, %s139
      %p151 = scmp.eq.s32.totalorder %s24, 1
      %p152 = por %p150, %p151
      %p154 = scmp.ne.s32.totalorder %s139, %s153
      %p155 = scmp.eq.s32.totalorder %s24, 0
      %p156 = por %p154, %p155
      %s157 = ssub.s32 %s18, %s25
      %p158 = scmp.eq.s32.totalorder %s157, 0
      %s160 = sadd.s32 %s159, 1
      %s161 = scalar_select %p158, %s159, %s160
      %p164 = pneg %p158
      %p165 = scmp.eq.s32.totalorder %s18, 1
      %p166 = por %p164, %p165
      %p167 = scmp.ne.s32.totalorder %s159, %s162
      %p168 = scmp.eq.s32.totalorder %s18, 0
      %p169 = por %p167, %p168
      %p170 = scmp.ne.s32.totalorder %s159, %s162
      %p171 = scmp.eq.s32.totalorder %s23, 1
      %p172 = por %p170, %p171
      %p173 = scmp.ne.s32.totalorder %s162, %s163
      %p174 = scmp.eq.s32.totalorder %s23, 0
      %p175 = por %p173, %p174
      %p176 = scmp.ne.s32.totalorder %s162, %s163
      %p177 = scmp.eq.s32.totalorder %s24, 1
      %p178 = por %p176, %p177
      %p180 = scmp.ne.s32.totalorder %s163, %s179
      %p181 = scmp.eq.s32.totalorder %s24, 0
      %p182 = por %p180, %p181
      %p183 = scmp.le.s32.totalorder 1, %s18
      %p184 = scmp.lt.s32.totalorder %s18, 3
      %p185 = pnand %p183, %p184
      %p186 = pneg %p185
      // Predicated region
      $region9: #{tpu_custom_call.1} parent=5 // pred_check
        _
      $region10: #{tpu_custom_call.1} parent=5 // pred_check_branch
        %188 = sbr.rel (%p185) target = $region12
      $region11: #{tpu_custom_call.1} parent=5 // pred_region
        %s189 = ssub.s32 %s18, 1
        // Predicated region
        $region13: #{tpu_custom_call.1} parent=11 // pred_check
          %p190 = pneg %p65
        $region14: #{tpu_custom_call.1} parent=11 // pred_check_branch
          %192 = sbr.rel (%p190) target = $region16
        $region15: #{tpu_custom_call.1} parent=11 // pred_region
          _
        $region16: #{tpu_custom_call.1} parent=11 // pred_fallthru
          _
        // Predicated region
        $region17: #{tpu_custom_call.1} parent=11 // pred_check
          %p193 = pneg %p86
        $region18: #{tpu_custom_call.1} parent=11 // pred_check_branch
          %195 = sbr.rel (%p193) target = $region20
        $region19: #{tpu_custom_call.1} parent=11 // pred_region
          _
        $region20: #{tpu_custom_call.1} parent=11 // pred_fallthru
          _
        // Predicated region
        $region21: #{tpu_custom_call.1} parent=11 // pred_check
          %p196 = pneg %p107
        $region22: #{tpu_custom_call.1} parent=11 // pred_check_branch
          %198 = sbr.rel (%p196) target = $region24
        $region23: #{tpu_custom_call.1} parent=11 // pred_region
          _
        $region24: #{tpu_custom_call.1} parent=11 // pred_fallthru
          _
        // Predicated region
        $region25: #{tpu_custom_call.1} parent=11 // pred_check
          %p199 = pneg %p128
        $region26: #{tpu_custom_call.1} parent=11 // pred_check_branch
          %201 = sbr.rel (%p199) target = $region28
        $region27: #{tpu_custom_call.1} parent=11 // pred_region
          _
        $region28: #{tpu_custom_call.1} parent=11 // pred_fallthru
          _
        // Predicated region
        $region29: #{tpu_custom_call.1} parent=11 // pred_check
          %p202 = pneg %p149
        $region30: #{tpu_custom_call.1} parent=11 // pred_check_branch
          %204 = sbr.rel (%p202) target = $region32
        $region31: #{tpu_custom_call.1} parent=11 // pred_region
          _
        $region32: #{tpu_custom_call.1} parent=11 // pred_fallthru
          _
      $region12: #{tpu_custom_call.1} parent=5 // pred_fallthru
        _
      %p205 = scmp.lt.s32.totalorder %s18, 2
      // Predicated region
      $region33: #{tpu_custom_call.1} parent=5 // pred_check
        %p206 = pneg %p205
      $region34: #{tpu_custom_call.1} parent=5 // pred_check_branch
        %208 = sbr.rel (%p206) target = $region36
      $region35: #{tpu_custom_call.1} parent=5 // pred_region
        // Predicated region
        $region37: #{tpu_custom_call.1} parent=35 // pred_check
          %p209 = pneg %p38
        $region38: #{tpu_custom_call.1} parent=35 // pred_check_branch
          %211 = sbr.rel (%p209) target = $region40
        $region39: #{tpu_custom_call.1} parent=35 // pred_region
          %s212 = sand.u32 %s28, 1
          %s213 = scalar_lea.sflag [#allocation3], %s212
          %s214 = sand.u32 %s28, 1
          %s215 = smul.addr %s214, 128
          %s216 = scalar_lea.vmem [#allocation2], %s215
          %218 = vsyncadd %s213, 0
          %s219 = smul.addr %s18, 16
          %s220 = smul.addr %s219, 8
          %s221 = scalar_lea.hbm %s0, %s220
          %s222 = sshll.u32 %s221, 4
          %s223 = int_to_ptr.hbm [resolvable:$true] %s222
          %s224 = sshll.u32 %s216, 4
          %s225 = int_to_ptr.vmem [resolvable:$true] %s224
          %230 = dma.hbm_to_vmem [thread:$0]  %s223, 2048, %s225, %s213, 256, 256, 16
        $region40: #{tpu_custom_call.1} parent=35 // pred_fallthru
          _
      $region36: #{tpu_custom_call.1} parent=5 // pred_fallthru
        _
      %p231 = scmp.le.s32.totalorder 1, %s18
      %p232 = scmp.lt.s32.totalorder %s18, 3
      %p233 = pnand %p231, %p232
      %p234 = pneg %p233
      // Predicated region
      $region41: #{tpu_custom_call.1} parent=5 // pred_check
        _
      $region42: #{tpu_custom_call.1} parent=5 // pred_check_branch
        %236 = sbr.rel (%p233) target = $region44
      $region43: #{tpu_custom_call.1} parent=5 // pred_region
        %s237 = ssub.s32 %s18, 1
        %s238 = sand.u32 %s31, 1
        %s239 = scalar_lea.sflag [#allocation3], %s238
        %s240 = sand.u32 %s31, 1
        %s241 = smul.addr %s240, 128
        %s242 = scalar_lea.vmem [#allocation2], %s241
        // Predicated region
        $region45: #{tpu_custom_call.1} parent=43 // pred_check
          %p243 = pneg %p44
        $region46: #{tpu_custom_call.1} parent=43 // pred_check_branch
          %245 = sbr.rel (%p243) target = $region48
        $region47: #{tpu_custom_call.1} parent=43 // pred_region
          %247 = dma.done %s239, 2048
        $region48: #{tpu_custom_call.1} parent=43 // pred_fallthru
          _
        %s248 = sand.u32 %s31, 1
        %s249 = scalar_lea.sflag [#allocation3], %s248
        %s250 = sand.u32 %s31, 1
        %s251 = smul.addr %s250, 128
        %s252 = scalar_lea.vmem [#allocation2], %s251
        %p253 = pneg %p44
        %p254 = pneg %p41
        %p255 = pneg %p65
        %p256 = pneg %p62
        %p257 = pneg %p86
        %p258 = pneg %p83
        %p259 = pneg %p107
        %p260 = pneg %p104
        %p261 = pneg %p128
        %p262 = pneg %p125
        %p263 = pneg %p149
        %p264 = pneg %p146
        %p265 = pneg %p175
        %p266 = pneg %p172
        %s267 = sand.u32 %s162, 1
        %s268 = scalar_lea.sflag [#allocation4], %s267
        %s269 = sand.u32 %s162, 1
        %s270 = smul.addr %s269, 8
        %s271 = scalar_lea.vmem [#allocation5], %s270
        %v273 = vld [vmem:[%s242] sm:$0xff]
        %v274 = vld [vmem:[%s242 + $0x8] sm:$0xff]
        %v275 = vld [vmem:[%s242 + $0x10] sm:$0xff]
        %v276 = vld [vmem:[%s242 + $0x18] sm:$0xff]
        %v277 = vld [vmem:[%s242 + $0x20] sm:$0xff]
        %v278 = vld [vmem:[%s242 + $0x28] sm:$0xff]
        %v279 = vld [vmem:[%s242 + $0x30] sm:$0xff]
        %v280 = vld [vmem:[%s242 + $0x38] sm:$0xff]
        %v281 = vld [vmem:[%s242 + $0x40] sm:$0xff]
        %v282 = vld [vmem:[%s242 + $0x48] sm:$0xff]
        %v283 = vld [vmem:[%s242 + $0x50] sm:$0xff]
        %v284 = vld [vmem:[%s242 + $0x58] sm:$0xff]
        %v285 = vld [vmem:[%s242 + $0x60] sm:$0xff]
        %v286 = vld [vmem:[%s242 + $0x68] sm:$0xff]
        %v287 = vld [vmem:[%s242 + $0x70] sm:$0xff]
        %v288 = vld [vmem:[%s242 + $0x78] sm:$0xff]
        %v289 = vadd.f32 %v273, %v274
        %290 = vadd.xlane.f32.xlu0 %v289
        %v291 = vpop.xlane.xlu0 %290
        %v292 = vadd.f32 %v275, %v276
        %293 = vadd.xlane.f32.xlu0 %v292
        %v294 = vpop.xlane.xlu0 %293
        %v295 = vadd.f32 %v277, %v278
        %296 = vadd.xlane.f32.xlu0 %v295
        %v297 = vpop.xlane.xlu0 %296
        %v298 = vadd.f32 %v279, %v280
        %299 = vadd.xlane.f32.xlu0 %v298
        %v300 = vpop.xlane.xlu0 %299
        %v301 = vadd.f32 %v281, %v282
        %302 = vadd.xlane.f32.xlu0 %v301
        %v303 = vpop.xlane.xlu0 %302
        %v304 = vadd.f32 %v283, %v284
        %305 = vadd.xlane.f32.xlu0 %v304
        %v306 = vpop.xlane.xlu0 %305
        %v307 = vadd.f32 %v285, %v286
        %308 = vadd.xlane.f32.xlu0 %v307
        %v309 = vpop.xlane.xlu0 %308
        %v310 = vadd.f32 %v287, %v288
        %311 = vadd.xlane.f32.xlu0 %v310
        %v312 = vpop.xlane.xlu0 %311
        %v313 = vmul.f32 %v273, %v273
        %v314 = vmul.f32 %v274, %v274
        %v315 = vmul.f32 %v275, %v275
        %v316 = vmul.f32 %v276, %v276
        %v317 = vmul.f32 %v277, %v277
        %v318 = vmul.f32 %v278, %v278
        %v319 = vmul.f32 %v279, %v279
        %v320 = vmul.f32 %v280, %v280
        %v321 = vmul.f32 %v281, %v281
        %v322 = vmul.f32 %v282, %v282
        %v323 = vmul.f32 %v283, %v283
        %v324 = vmul.f32 %v284, %v284
        %v325 = vmul.f32 %v285, %v285
        %v326 = vmul.f32 %v286, %v286
        %v327 = vmul.f32 %v287, %v287
        %v328 = vmul.f32 %v288, %v288
        %v329 = vadd.f32 %v313, %v314
        %330 = vadd.xlane.f32.xlu0 %v329
        %v331 = vpop.xlane.xlu0 %330
        %v332 = vadd.f32 %v315, %v316
        %333 = vadd.xlane.f32.xlu0 %v332
        %v334 = vpop.xlane.xlu0 %333
        %v335 = vadd.f32 %v317, %v318
        %336 = vadd.xlane.f32.xlu0 %v335
        %v337 = vpop.xlane.xlu0 %336
        %v338 = vadd.f32 %v319, %v320
        %339 = vadd.xlane.f32.xlu0 %v338
        %v340 = vpop.xlane.xlu0 %339
        %v341 = vadd.f32 %v321, %v322
        %342 = vadd.xlane.f32.xlu0 %v341
        %v343 = vpop.xlane.xlu0 %342
        %v344 = vadd.f32 %v323, %v324
        %345 = vadd.xlane.f32.xlu0 %v344
        %v346 = vpop.xlane.xlu0 %345
        %v347 = vadd.f32 %v325, %v326
        %348 = vadd.xlane.f32.xlu0 %v347
        %v349 = vpop.xlane.xlu0 %348
        %v350 = vadd.f32 %v327, %v328
        %351 = vadd.xlane.f32.xlu0 %v350
        %v352 = vpop.xlane.xlu0 %351
        %v353 = vld [vmem:[%s3] sm:$0xff]
        %v354 = vld [vmem:[%s3 + $0x8] sm:$0xff]
        %v355 = vld [vmem:[%s3 + $0x10] sm:$0xff]
        %v356 = vld [vmem:[%s3 + $0x18] sm:$0xff]
        %v357 = vld [vmem:[%s3 + $0x20] sm:$0xff]
        %v358 = vld [vmem:[%s3 + $0x28] sm:$0xff]
        %v359 = vld [vmem:[%s3 + $0x30] sm:$0xff]
        %v360 = vld [vmem:[%s3 + $0x38] sm:$0xff]
        %vm361 = vcmask 523264
        %v363 = vsel %vm361, %v353, 0
        %v366 = vsel %vm361, %v354, 0
        %v369 = vsel %vm361, %v355, 0
        %v372 = vsel %vm361, %v356, 0
        %v375 = vsel %vm361, %v357, 0
        %v378 = vsel %vm361, %v358, 0
        %v381 = vsel %vm361, %v359, 0
        %v384 = vsel %vm361, %v360, 0
        %386 = vmatpush.msra.mxu0 0.0
        %387 = vmatpush.msra.mxu0 0.0
        %388 = vmatpush.msra.mxu0 0.0
        %389 = vmatpush.msra.mxu0 0.0
        %390 = vmatpush.msra.mxu0 0.0
        %391 = vmatpush.msra.mxu0 0.0
        %392 = vmatpush.msra.mxu0 0.0
        %393 = vmatpush.msra.mxu0 0.0
        %394 = vmatpush.msra.mxu0 %v312
        %395 = vmatpush.msra.mxu0 %v309
        %396 = vmatpush.msra.mxu0 %v306
        %397 = vmatpush.msra.mxu0 %v303
        %398 = vmatpush.msra.mxu0 %v300
        %399 = vmatpush.msra.mxu0 %v297
        %400 = vmatpush.msra.mxu0 %v294
        %401 = vmatpush.msra.mxu0 %v291
        %402 = vmatmul.f32.gmra.mxu0 %v363
        %v403 = vpop.f32.mrf.mxu0
        %v404 = vadd.f32 0.0, %v403
        %405 = vmatmul.f32.gmra.mxu0 %v366
        %v406 = vpop.f32.mrf.mxu0
        %v407 = vadd.f32 0.0, %v406
        %408 = vmatmul.f32.gmra.mxu0 %v369
        %v409 = vpop.f32.mrf.mxu0
        %v410 = vadd.f32 0.0, %v409
        %411 = vmatmul.f32.gmra.mxu0 %v372
        %v412 = vpop.f32.mrf.mxu0
        %v413 = vadd.f32 0.0, %v412
        %414 = vmatmul.f32.gmra.mxu0 %v375
        %v415 = vpop.f32.mrf.mxu0
        %v416 = vadd.f32 0.0, %v415
        %417 = vmatmul.f32.gmra.mxu0 %v378
        %v418 = vpop.f32.mrf.mxu0
        %v419 = vadd.f32 0.0, %v418
        %420 = vmatmul.f32.gmra.mxu0 %v381
        %v421 = vpop.f32.mrf.mxu0
        %v422 = vadd.f32 0.0, %v421
        %423 = vmatmul.f32.gmra.mxu0 %v384
        %v424 = vpop.f32.mrf.mxu0
        %v425 = vadd.f32 0.0, %v424
        %426 = vdwg.mxu0
        %427 = vmatpush.msra.mxu0 0.0
        %428 = vmatpush.msra.mxu0 0.0
        %429 = vmatpush.msra.mxu0 0.0
        %430 = vmatpush.msra.mxu0 0.0
        %431 = vmatpush.msra.mxu0 0.0
        %432 = vmatpush.msra.mxu0 0.0
        %433 = vmatpush.msra.mxu0 0.0
        %434 = vmatpush.msra.mxu0 0.0
        %435 = vmatpush.msra.mxu0 %v352
        %436 = vmatpush.msra.mxu0 %v349
        %437 = vmatpush.msra.mxu0 %v346
        %438 = vmatpush.msra.mxu0 %v343
        %439 = vmatpush.msra.mxu0 %v340
        %440 = vmatpush.msra.mxu0 %v337
        %441 = vmatpush.msra.mxu0 %v334
        %442 = vmatpush.msra.mxu0 %v331
        %443 = vmatmul.f32.gmra.mxu0 %v363
        %v444 = vpop.f32.mrf.mxu0
        %v445 = vadd.f32 0.0, %v444
        %446 = vmatmul.f32.gmra.mxu0 %v366
        %v447 = vpop.f32.mrf.mxu0
        %v448 = vadd.f32 0.0, %v447
        %449 = vmatmul.f32.gmra.mxu0 %v369
        %v450 = vpop.f32.mrf.mxu0
        %v451 = vadd.f32 0.0, %v450
        %452 = vmatmul.f32.gmra.mxu0 %v372
        %v453 = vpop.f32.mrf.mxu0
        %v454 = vadd.f32 0.0, %v453
        %455 = vmatmul.f32.gmra.mxu0 %v375
        %v456 = vpop.f32.mrf.mxu0
        %v457 = vadd.f32 0.0, %v456
        %458 = vmatmul.f32.gmra.mxu0 %v378
        %v459 = vpop.f32.mrf.mxu0
        %v460 = vadd.f32 0.0, %v459
        %461 = vmatmul.f32.gmra.mxu0 %v381
        %v462 = vpop.f32.mrf.mxu0
        %v463 = vadd.f32 0.0, %v462
        %464 = vmatmul.f32.gmra.mxu0 %v384
        %v465 = vpop.f32.mrf.mxu0
        %v466 = vadd.f32 0.0, %v465
        %467 = vdwg.mxu0
        %v468 = vmul.f32 %v404, %v404
        %v469 = vmul.f32 %v407, %v407
        %v470 = vmul.f32 %v410, %v410
        %v471 = vmul.f32 %v413, %v413
        %v472 = vmul.f32 %v416, %v416
        %v473 = vmul.f32 %v419, %v419
        %v474 = vmul.f32 %v422, %v422
        %v475 = vmul.f32 %v425, %v425
        %v476 = vsub.f32 %v445, %v468
        %v477 = vsub.f32 %v448, %v469
        %v478 = vsub.f32 %v451, %v470
        %v479 = vsub.f32 %v454, %v471
        %v480 = vsub.f32 %v457, %v472
        %v481 = vsub.f32 %v460, %v473
        %v482 = vsub.f32 %v463, %v474
        %v483 = vsub.f32 %v466, %v475
        %v484 = vadd.f32 %v476, 1e-05
        %v485 = vadd.f32 %v477, 1e-05
        %v486 = vadd.f32 %v478, 1e-05
        %v487 = vadd.f32 %v479, 1e-05
        %v488 = vadd.f32 %v480, 1e-05
        %v489 = vadd.f32 %v481, 1e-05
        %v490 = vadd.f32 %v482, 1e-05
        %v491 = vadd.f32 %v483, 1e-05
        %v492 = vrsqrt.pop %v484
        %v493 = vmul.f32 %v492, %v484
        %v494 = vmul.f32 %v493, %v492
        %v495 = vmul.f32 0.5, %v494
        %v496 = vsub.f32 1.5, %v495
        %v497 = vmul.f32 %v492, %v496
        %vm498 = vweird.f32 %v484
        %vm499 = vweird.f32 %v492
        %vm500 = vmor %vm498, %vm499
        %v501 = vsel %vm500, %v492, %v497
        %v502 = vrsqrt.pop %v485
        %v503 = vmul.f32 %v502, %v485
        %v504 = vmul.f32 %v503, %v502
        %v505 = vmul.f32 0.5, %v504
        %v506 = vsub.f32 1.5, %v505
        %v507 = vmul.f32 %v502, %v506
        %vm508 = vweird.f32 %v485
        %vm509 = vweird.f32 %v502
        %vm510 = vmor %vm508, %vm509
        %v511 = vsel %vm510, %v502, %v507
        %v512 = vrsqrt.pop %v486
        %v513 = vmul.f32 %v512, %v486
        %v514 = vmul.f32 %v513, %v512
        %v515 = vmul.f32 0.5, %v514
        %v516 = vsub.f32 1.5, %v515
        %v517 = vmul.f32 %v512, %v516
        %vm518 = vweird.f32 %v486
        %vm519 = vweird.f32 %v512
        %vm520 = vmor %vm518, %vm519
        %v521 = vsel %vm520, %v512, %v517
        %v522 = vrsqrt.pop %v487
        %v523 = vmul.f32 %v522, %v487
        %v524 = vmul.f32 %v523, %v522
        %v525 = vmul.f32 0.5, %v524
        %v526 = vsub.f32 1.5, %v525
        %v527 = vmul.f32 %v522, %v526
        %vm528 = vweird.f32 %v487
        %vm529 = vweird.f32 %v522
        %vm530 = vmor %vm528, %vm529
        %v531 = vsel %vm530, %v522, %v527
        %v532 = vrsqrt.pop %v488
        %v533 = vmul.f32 %v532, %v488
        %v534 = vmul.f32 %v533, %v532
        %v535 = vmul.f32 0.5, %v534
        %v536 = vsub.f32 1.5, %v535
        %v537 = vmul.f32 %v532, %v536
        %vm538 = vweird.f32 %v488
        %vm539 = vweird.f32 %v532
        %vm540 = vmor %vm538, %vm539
        %v541 = vsel %vm540, %v532, %v537
        %v542 = vrsqrt.pop %v489
        %v543 = vmul.f32 %v542, %v489
        %v544 = vmul.f32 %v543, %v542
        %v545 = vmul.f32 0.5, %v544
        %v546 = vsub.f32 1.5, %v545
        %v547 = vmul.f32 %v542, %v546
        %vm548 = vweird.f32 %v489
        %vm549 = vweird.f32 %v542
        %vm550 = vmor %vm548, %vm549
        %v551 = vsel %vm550, %v542, %v547
        %v552 = vrsqrt.pop %v490
        %v553 = vmul.f32 %v552, %v490
        %v554 = vmul.f32 %v553, %v552
        %v555 = vmul.f32 0.5, %v554
        %v556 = vsub.f32 1.5, %v555
        %v557 = vmul.f32 %v552, %v556
        %vm558 = vweird.f32 %v490
        %vm559 = vweird.f32 %v552
        %vm560 = vmor %vm558, %vm559
        %v561 = vsel %vm560, %v552, %v557
        %v562 = vrsqrt.pop %v491
        %v563 = vmul.f32 %v562, %v491
        %v564 = vmul.f32 %v563, %v562
        %v565 = vmul.f32 0.5, %v564
        %v566 = vsub.f32 1.5, %v565
        %v567 = vmul.f32 %v562, %v566
        %vm568 = vweird.f32 %v491
        %vm569 = vweird.f32 %v562
        %vm570 = vmor %vm568, %vm569
        %v571 = vsel %vm570, %v562, %v567
        %v572 = vld [vmem:[%s1] sm:$0xff]
        %v573 = vld [vmem:[%s1 + $0x8] sm:$0xff]
        %v574 = vld [vmem:[%s1 + $0x10] sm:$0xff]
        %v575 = vld [vmem:[%s1 + $0x18] sm:$0xff]
        %v576 = vld [vmem:[%s1 + $0x20] sm:$0xff]
        %v577 = vld [vmem:[%s1 + $0x28] sm:$0xff]
        %v578 = vld [vmem:[%s1 + $0x30] sm:$0xff]
        %v579 = vld [vmem:[%s1 + $0x38] sm:$0xff]
        %v580 = vmul.f32 %v501, %v572
        %v581 = vmul.f32 %v511, %v573
        %v582 = vmul.f32 %v521, %v574
        %v583 = vmul.f32 %v531, %v575
        %v584 = vmul.f32 %v541, %v576
        %v585 = vmul.f32 %v551, %v577
        %v586 = vmul.f32 %v561, %v578
        %v587 = vmul.f32 %v571, %v579
        %v588 = vld [vmem:[%s2] sm:$0xff]
        %v589 = vld [vmem:[%s2 + $0x8] sm:$0xff]
        %v590 = vld [vmem:[%s2 + $0x10] sm:$0xff]
        %v591 = vld [vmem:[%s2 + $0x18] sm:$0xff]
        %v592 = vld [vmem:[%s2 + $0x20] sm:$0xff]
        %v593 = vld [vmem:[%s2 + $0x28] sm:$0xff]
        %v594 = vld [vmem:[%s2 + $0x30] sm:$0xff]
        %v595 = vld [vmem:[%s2 + $0x38] sm:$0xff]
        %v596 = vmul.f32 %v404, %v580
        %v597 = vmul.f32 %v407, %v581
        %v598 = vmul.f32 %v410, %v582
        %v599 = vmul.f32 %v413, %v583
        %v600 = vmul.f32 %v416, %v584
        %v601 = vmul.f32 %v419, %v585
        %v602 = vmul.f32 %v422, %v586
        %v603 = vmul.f32 %v425, %v587
        %v604 = vsub.f32 %v588, %v596
        %v605 = vsub.f32 %v589, %v597
        %v606 = vsub.f32 %v590, %v598
        %v607 = vsub.f32 %v591, %v599
        %v608 = vsub.f32 %v592, %v600
        %v609 = vsub.f32 %v593, %v601
        %v610 = vsub.f32 %v594, %v602
        %v611 = vsub.f32 %v595, %v603
        %613 = vset.pattern.permute.xlu0 0
        %614 = vperm.xlu0 %613, %v580
        %v615 = vpop.permute.xlu0 %614
        %618 = vset.pattern.permute.xlu0 0
        %619 = vperm.xlu0 %618, %v581
        %v620 = vpop.permute.xlu0 %619
        %623 = vset.pattern.permute.xlu0 0
        %624 = vperm.xlu0 %623, %v582
        %v625 = vpop.permute.xlu0 %624
        %628 = vset.pattern.permute.xlu0 0
        %629 = vperm.xlu0 %628, %v583
        %v630 = vpop.permute.xlu0 %629
        %633 = vset.pattern.permute.xlu0 0
        %634 = vperm.xlu0 %633, %v584
        %v635 = vpop.permute.xlu0 %634
        %638 = vset.pattern.permute.xlu0 0
        %639 = vperm.xlu0 %638, %v585
        %v640 = vpop.permute.xlu0 %639
        %643 = vset.pattern.permute.xlu0 0
        %644 = vperm.xlu0 %643, %v586
        %v645 = vpop.permute.xlu0 %644
        %648 = vset.pattern.permute.xlu0 0
        %649 = vperm.xlu0 %648, %v587
        %v650 = vpop.permute.xlu0 %649
        %v652 = vmul.f32 %v273, %v615
        %v653 = vmul.f32 %v274, %v615
        %v654 = vmul.f32 %v275, %v620
        %v655 = vmul.f32 %v276, %v620
        %v656 = vmul.f32 %v277, %v625
        %v657 = vmul.f32 %v278, %v625
        %v658 = vmul.f32 %v279, %v630
        %v659 = vmul.f32 %v280, %v630
        %v660 = vmul.f32 %v281, %v635
        %v661 = vmul.f32 %v282, %v635
        %v662 = vmul.f32 %v283, %v640
        %v663 = vmul.f32 %v284, %v640
        %v664 = vmul.f32 %v285, %v645
        %v665 = vmul.f32 %v286, %v645
        %v666 = vmul.f32 %v287, %v650
        %v667 = vmul.f32 %v288, %v650
        %669 = vset.pattern.permute.xlu0 0
        %670 = vperm.xlu0 %669, %v604
        %v671 = vpop.permute.xlu0 %670
        %674 = vset.pattern.permute.xlu0 0
        %675 = vperm.xlu0 %674, %v605
        %v676 = vpop.permute.xlu0 %675
        %679 = vset.pattern.permute.xlu0 0
        %680 = vperm.xlu0 %679, %v606
        %v681 = vpop.permute.xlu0 %680
        %684 = vset.pattern.permute.xlu0 0
        %685 = vperm.xlu0 %684, %v607
        %v686 = vpop.permute.xlu0 %685
        %689 = vset.pattern.permute.xlu0 0
        %690 = vperm.xlu0 %689, %v608
        %v691 = vpop.permute.xlu0 %690
        %694 = vset.pattern.permute.xlu0 0
        %695 = vperm.xlu0 %694, %v609
        %v696 = vpop.permute.xlu0 %695
        %699 = vset.pattern.permute.xlu0 0
        %700 = vperm.xlu0 %699, %v610
        %v701 = vpop.permute.xlu0 %700
        %704 = vset.pattern.permute.xlu0 0
        %705 = vperm.xlu0 %704, %v611
        %v706 = vpop.permute.xlu0 %705
        %v708 = vadd.f32 %v652, %v671
        %v709 = vadd.f32 %v653, %v671
        %v710 = vadd.f32 %v654, %v676
        %v711 = vadd.f32 %v655, %v676
        %v712 = vadd.f32 %v656, %v681
        %v713 = vadd.f32 %v657, %v681
        %v714 = vadd.f32 %v658, %v686
        %v715 = vadd.f32 %v659, %v686
        %v716 = vadd.f32 %v660, %v691
        %v717 = vadd.f32 %v661, %v691
        %v718 = vadd.f32 %v662, %v696
        %v719 = vadd.f32 %v663, %v696
        %v720 = vadd.f32 %v664, %v701
        %v721 = vadd.f32 %v665, %v701
        %v722 = vadd.f32 %v666, %v706
        %v723 = vadd.f32 %v667, %v706
        %v724 = vsub.f32 0.0, %v708
        %v725 = vsub.f32 0.0, %v709
        %v726 = vsub.f32 0.0, %v710
        %v727 = vsub.f32 0.0, %v711
        %v728 = vsub.f32 0.0, %v712
        %v729 = vsub.f32 0.0, %v713
        %v730 = vsub.f32 0.0, %v714
        %v731 = vsub.f32 0.0, %v715
        %v732 = vsub.f32 0.0, %v716
        %v733 = vsub.f32 0.0, %v717
        %v734 = vsub.f32 0.0, %v718
        %v735 = vsub.f32 0.0, %v719
        %v736 = vsub.f32 0.0, %v720
        %v737 = vsub.f32 0.0, %v721
        %v738 = vsub.f32 0.0, %v722
        %v739 = vsub.f32 0.0, %v723
        %v740 = vmul.f32 %v724, 1.442695
        %v741 = vpow.pop %v740
        %v742 = vmul.f32 %v725, 1.442695
        %v743 = vpow.pop %v742
        %v744 = vmul.f32 %v726, 1.442695
        %v745 = vpow.pop %v744
        %v746 = vmul.f32 %v727, 1.442695
        %v747 = vpow.pop %v746
        %v748 = vmul.f32 %v728, 1.442695
        %v749 = vpow.pop %v748
        %v750 = vmul.f32 %v729, 1.442695
        %v751 = vpow.pop %v750
        %v752 = vmul.f32 %v730, 1.442695
        %v753 = vpow.pop %v752
        %v754 = vmul.f32 %v731, 1.442695
        %v755 = vpow.pop %v754
        %v756 = vmul.f32 %v732, 1.442695
        %v757 = vpow.pop %v756
        %v758 = vmul.f32 %v733, 1.442695
        %v759 = vpow.pop %v758
        %v760 = vmul.f32 %v734, 1.442695
        %v761 = vpow.pop %v760
        %v762 = vmul.f32 %v735, 1.442695
        %v763 = vpow.pop %v762
        %v764 = vmul.f32 %v736, 1.442695
        %v765 = vpow.pop %v764
        %v766 = vmul.f32 %v737, 1.442695
        %v767 = vpow.pop %v766
        %v768 = vmul.f32 %v738, 1.442695
        %v769 = vpow.pop %v768
        %v770 = vmul.f32 %v739, 1.442695
        %v771 = vpow.pop %v770
        %v772 = vadd.f32 %v741, 1.0
        %v773 = vadd.f32 %v743, 1.0
        %v774 = vadd.f32 %v745, 1.0
        %v775 = vadd.f32 %v747, 1.0
        %v776 = vadd.f32 %v749, 1.0
        %v777 = vadd.f32 %v751, 1.0
        %v778 = vadd.f32 %v753, 1.0
        %v779 = vadd.f32 %v755, 1.0
        %v780 = vadd.f32 %v757, 1.0
        %v781 = vadd.f32 %v759, 1.0
        %v782 = vadd.f32 %v761, 1.0
        %v783 = vadd.f32 %v763, 1.0
        %v784 = vadd.f32 %v765, 1.0
        %v785 = vadd.f32 %v767, 1.0
        %v786 = vadd.f32 %v769, 1.0
        %v787 = vadd.f32 %v771, 1.0
        %v788 = vrcp.pop %v772
        %v789 = vrcp.pop %v773
        %v790 = vrcp.pop %v774
        %v791 = vrcp.pop %v775
        %v792 = vrcp.pop %v776
        %v793 = vrcp.pop %v777
        %v794 = vrcp.pop %v778
        %v795 = vrcp.pop %v779
        %v796 = vrcp.pop %v780
        %v797 = vrcp.pop %v781
        %v798 = vrcp.pop %v782
        %v799 = vrcp.pop %v783
        %v800 = vrcp.pop %v784
        %v801 = vrcp.pop %v785
        %v802 = vrcp.pop %v786
        %v803 = vrcp.pop %v787
        %v804 = vmul.f32 %v708, %v788
        %v805 = vmul.f32 %v709, %v789
        %v806 = vmul.f32 %v710, %v790
        %v807 = vmul.f32 %v711, %v791
        %v808 = vmul.f32 %v712, %v792
        %v809 = vmul.f32 %v713, %v793
        %v810 = vmul.f32 %v714, %v794
        %v811 = vmul.f32 %v715, %v795
        %v812 = vmul.f32 %v716, %v796
        %v813 = vmul.f32 %v717, %v797
        %v814 = vmul.f32 %v718, %v798
        %v815 = vmul.f32 %v719, %v799
        %v816 = vmul.f32 %v720, %v800
        %v817 = vmul.f32 %v721, %v801
        %v818 = vmul.f32 %v722, %v802
        %v819 = vmul.f32 %v723, %v803
        %v820 = vlaneseq
        %v821 = vand.u32 %v820, 127
        %v822 = vadd.s32 %v821, 128
        %vm823 = vcmp.lt.s32.totalorder %v821, 0
        %v824 = vsub.s32 0, %v821
        %v825 = vsel %vm823, %v824, %v821
        %v826 = vshrl.u32 %v825, 4
        %v827 = vand.u32 %v825, 15
        %v828 = vsub.s32 0, %v827
        %v829 = vsel %vm823, %v828, %v827
        %vm830 = vcmp.lt.s32.totalorder %v822, 0
        %v831 = vsub.s32 0, %v822
        %v832 = vsel %vm830, %v831, %v822
        %v833 = vshrl.u32 %v832, 4
        %v834 = vand.u32 %v832, 15
        %v835 = vsub.s32 0, %v834
        %v836 = vsel %vm830, %v835, %v834
        %vm837 = vcmp.ne.s32.totalorder %v829, 0
        %vm838 = vcmp.ne.s32.totalorder %v836, 0
        %vm839 = vcmp.lt.s32.totalorder %v829, 0
        %vm840 = vcmp.lt.s32.totalorder %v836, 0
        %vm841 = vmand %vm839, %vm837
        %vm842 = vmand %vm840, %vm838
        %v843 = vadd.s32 %v829, 16
        %v844 = vadd.s32 %v836, 16
        %v845 = vsel %vm841, %v843, %v829
        %v846 = vsel %vm842, %v844, %v836
        %vm847 = vcmp.ne.s32.totalorder %v845, 0
        %vm848 = vcmp.ne.s32.totalorder %v846, 0
        %849 = vrot.lane.b32.xlu0 %v804, 1
        %v850 = vpop.permute.xlu0 %849
        %851 = vrot.lane.b32.xlu0 %v806, 1
        %v852 = vpop.permute.xlu0 %851
        %853 = vrot.lane.b32.xlu0 %v808, 1
        %v854 = vpop.permute.xlu0 %853
        %855 = vrot.lane.b32.xlu0 %v810, 1
        %v856 = vpop.permute.xlu0 %855
        %857 = vrot.lane.b32.xlu0 %v812, 1
        %v858 = vpop.permute.xlu0 %857
        %859 = vrot.lane.b32.xlu0 %v814, 1
        %v860 = vpop.permute.xlu0 %859
        %861 = vrot.lane.b32.xlu0 %v816, 1
        %v862 = vpop.permute.xlu0 %861
        %863 = vrot.lane.b32.xlu0 %v818, 1
        %v864 = vpop.permute.xlu0 %863
        %865 = vrot.lane.b32.xlu0 %v805, 1
        %v866 = vpop.permute.xlu0 %865
        %867 = vrot.lane.b32.xlu0 %v807, 1
        %v868 = vpop.permute.xlu0 %867
        %869 = vrot.lane.b32.xlu0 %v809, 1
        %v870 = vpop.permute.xlu0 %869
        %871 = vrot.lane.b32.xlu0 %v811, 1
        %v872 = vpop.permute.xlu0 %871
        %873 = vrot.lane.b32.xlu0 %v813, 1
        %v874 = vpop.permute.xlu0 %873
        %875 = vrot.lane.b32.xlu0 %v815, 1
        %v876 = vpop.permute.xlu0 %875
        %877 = vrot.lane.b32.xlu0 %v817, 1
        %v878 = vpop.permute.xlu0 %877
        %879 = vrot.lane.b32.xlu0 %v819, 1
        %v880 = vpop.permute.xlu0 %879
        %vm881 = vcmp.lt.s32.totalorder %v821, 1
        %v882 = vsel %vm881, %v850, %v866
        %v883 = vsel %vm881, %v852, %v868
        %v884 = vsel %vm881, %v854, %v870
        %v885 = vsel %vm881, %v856, %v872
        %v886 = vsel %vm881, %v858, %v874
        %v887 = vsel %vm881, %v860, %v876
        %v888 = vsel %vm881, %v862, %v878
        %v889 = vsel %vm881, %v864, %v880
        %v890 = vsel %vm881, %v866, %v850
        %v891 = vsel %vm881, %v868, %v852
        %v892 = vsel %vm881, %v870, %v854
        %v893 = vsel %vm881, %v872, %v856
        %v894 = vsel %vm881, %v874, %v858
        %v895 = vsel %vm881, %v876, %v860
        %v896 = vsel %vm881, %v878, %v862
        %v897 = vsel %vm881, %v880, %v864
        %v898 = vsel %vm847, 1, 0
        %v899 = vsel %vm848, 1, 0
        %vm900 = vcmp.eq.s32.totalorder %v898, 1
        %vm901 = vcmp.eq.s32.totalorder %v899, 1
        %v902 = vsel %vm900, %v890, 0.0
        %v903 = vsel %vm901, %v882, 0.0
        %v904 = vsel %vm900, %v891, 0.0
        %v905 = vsel %vm901, %v883, 0.0
        %v906 = vsel %vm900, %v892, 0.0
        %v907 = vsel %vm901, %v884, 0.0
        %v908 = vsel %vm900, %v893, 0.0
        %v909 = vsel %vm901, %v885, 0.0
        %v910 = vsel %vm900, %v894, 0.0
        %v911 = vsel %vm901, %v886, 0.0
        %v912 = vsel %vm900, %v895, 0.0
        %v913 = vsel %vm901, %v887, 0.0
        %v914 = vsel %vm900, %v896, 0.0
        %v915 = vsel %vm901, %v888, 0.0
        %v916 = vsel %vm900, %v897, 0.0
        %v917 = vsel %vm901, %v889, 0.0
        %vm918 = vcmp.ne.s32.totalorder %v845, 15
        %vm919 = vcmp.ne.s32.totalorder %v846, 15
        %920 = vrot.lane.b32.xlu0 %v804, 127
        %v921 = vpop.permute.xlu0 %920
        %922 = vrot.lane.b32.xlu0 %v806, 127
        %v923 = vpop.permute.xlu0 %922
        %924 = vrot.lane.b32.xlu0 %v808, 127
        %v925 = vpop.permute.xlu0 %924
        %926 = vrot.lane.b32.xlu0 %v810, 127
        %v927 = vpop.permute.xlu0 %926
        %928 = vrot.lane.b32.xlu0 %v812, 127
        %v929 = vpop.permute.xlu0 %928
        %930 = vrot.lane.b32.xlu0 %v814, 127
        %v931 = vpop.permute.xlu0 %930
        %932 = vrot.lane.b32.xlu0 %v816, 127
        %v933 = vpop.permute.xlu0 %932
        %934 = vrot.lane.b32.xlu0 %v818, 127
        %v935 = vpop.permute.xlu0 %934
        %936 = vrot.lane.b32.xlu0 %v805, 127
        %v937 = vpop.permute.xlu0 %936
        %938 = vrot.lane.b32.xlu0 %v807, 127
        %v939 = vpop.permute.xlu0 %938
        %940 = vrot.lane.b32.xlu0 %v809, 127
        %v941 = vpop.permute.xlu0 %940
        %942 = vrot.lane.b32.xlu0 %v811, 127
        %v943 = vpop.permute.xlu0 %942
        %944 = vrot.lane.b32.xlu0 %v813, 127
        %v945 = vpop.permute.xlu0 %944
        %946 = vrot.lane.b32.xlu0 %v815, 127
        %v947 = vpop.permute.xlu0 %946
        %948 = vrot.lane.b32.xlu0 %v817, 127
        %v949 = vpop.permute.xlu0 %948
        %950 = vrot.lane.b32.xlu0 %v819, 127
        %v951 = vpop.permute.xlu0 %950
        %vm952 = vcmp.lt.s32.totalorder %v821, 127
        %v953 = vsel %vm952, %v921, %v937
        %v954 = vsel %vm952, %v923, %v939
        %v955 = vsel %vm952, %v925, %v941
        %v956 = vsel %vm952, %v927, %v943
        %v957 = vsel %vm952, %v929, %v945
        %v958 = vsel %vm952, %v931, %v947
        %v959 = vsel %vm952, %v933, %v949
        %v960 = vsel %vm952, %v935, %v951
        %v961 = vsel %vm952, %v937, %v921
        %v962 = vsel %vm952, %v939, %v923
        %v963 = vsel %vm952, %v941, %v925
        %v964 = vsel %vm952, %v943, %v927
        %v965 = vsel %vm952, %v945, %v929
        %v966 = vsel %vm952, %v947, %v931
        %v967 = vsel %vm952, %v949, %v933
        %v968 = vsel %vm952, %v951, %v935
        %v969 = vsel %vm918, 1, 0
        %v970 = vsel %vm919, 1, 0
        %vm971 = vcmp.eq.s32.totalorder %v969, 1
        %vm972 = vcmp.eq.s32.totalorder %v970, 1
        %v973 = vsel %vm971, %v953, 0.0
        %v974 = vsel %vm972, %v961, 0.0
        %v975 = vsel %vm971, %v954, 0.0
        %v976 = vsel %vm972, %v962, 0.0
        %v977 = vsel %vm971, %v955, 0.0
        %v978 = vsel %vm972, %v963, 0.0
        %v979 = vsel %vm971, %v956, 0.0
        %v980 = vsel %vm972, %v964, 0.0
        %v981 = vsel %vm971, %v957, 0.0
        %v982 = vsel %vm972, %v965, 0.0
        %v983 = vsel %vm971, %v958, 0.0
        %v984 = vsel %vm972, %v966, 0.0
        %v985 = vsel %vm971, %v959, 0.0
        %v986 = vsel %vm972, %v967, 0.0
        %v987 = vsel %vm971, %v960, 0.0
        %v988 = vsel %vm972, %v968, 0.0
        %s989 = scalar_lea.vmem %s4, 4
        %v990 = vld [vmem:[%s989] sm:$0xf]
        %v991 = vpack.c.bf16 %v904, %v902
        %v992 = vpack.c.bf16 %v905, %v903
        %v993 = vpack.c.bf16 %v908, %v906
        %v994 = vpack.c.bf16 %v909, %v907
        %v995 = vpack.c.bf16 %v912, %v910
        %v996 = vpack.c.bf16 %v913, %v911
        %v997 = vpack.c.bf16 %v916, %v914
        %v998 = vpack.c.bf16 %v917, %v915
        %v999 = vpack.c.bf16 %v806, %v804
        %v1000 = vpack.c.bf16 %v807, %v805
        %v1001 = vpack.c.bf16 %v810, %v808
        %v1002 = vpack.c.bf16 %v811, %v809
        %v1003 = vpack.c.bf16 %v814, %v812
        %v1004 = vpack.c.bf16 %v815, %v813
        %v1005 = vpack.c.bf16 %v818, %v816
        %v1006 = vpack.c.bf16 %v819, %v817
        %v1007 = vpack.c.bf16 %v975, %v973
        %v1008 = vpack.c.bf16 %v976, %v974
        %v1009 = vpack.c.bf16 %v979, %v977
        %v1010 = vpack.c.bf16 %v980, %v978
        %v1011 = vpack.c.bf16 %v983, %v981
        %v1012 = vpack.c.bf16 %v984, %v982
        %v1013 = vpack.c.bf16 %v987, %v985
        %v1014 = vpack.c.bf16 %v988, %v986
        %v1015 = vld [vmem:[%s4] sm:$0xf]
        %1016 = vrot.lane.b32.xlu0 %v902, 16
        %v1017 = vpop.permute.xlu0 %1016
        %1018 = vrot.lane.b32.xlu0 %v904, 16
        %v1019 = vpop.permute.xlu0 %1018
        %1020 = vrot.lane.b32.xlu0 %v906, 16
        %v1021 = vpop.permute.xlu0 %1020
        %1022 = vrot.lane.b32.xlu0 %v908, 16
        %v1023 = vpop.permute.xlu0 %1022
        %1024 = vrot.lane.b32.xlu0 %v910, 16
        %v1025 = vpop.permute.xlu0 %1024
        %1026 = vrot.lane.b32.xlu0 %v912, 16
        %v1027 = vpop.permute.xlu0 %1026
        %1028 = vrot.lane.b32.xlu0 %v914, 16
        %v1029 = vpop.permute.xlu0 %1028
        %1030 = vrot.lane.b32.xlu0 %v916, 16
        %v1031 = vpop.permute.xlu0 %1030
        %1032 = vrot.lane.b32.xlu0 %v804, 16
        %v1033 = vpop.permute.xlu0 %1032
        %1034 = vrot.lane.b32.xlu0 %v806, 16
        %v1035 = vpop.permute.xlu0 %1034
        %1036 = vrot.lane.b32.xlu0 %v808, 16
        %v1037 = vpop.permute.xlu0 %1036
        %1038 = vrot.lane.b32.xlu0 %v810, 16
        %v1039 = vpop.permute.xlu0 %1038
        %1040 = vrot.lane.b32.xlu0 %v812, 16
        %v1041 = vpop.permute.xlu0 %1040
        %1042 = vrot.lane.b32.xlu0 %v814, 16
        %v1043 = vpop.permute.xlu0 %1042
        %1044 = vrot.lane.b32.xlu0 %v816, 16
        %v1045 = vpop.permute.xlu0 %1044
        %1046 = vrot.lane.b32.xlu0 %v818, 16
        %v1047 = vpop.permute.xlu0 %1046
        %1048 = vrot.lane.b32.xlu0 %v973, 16
        %v1049 = vpop.permute.xlu0 %1048
        %1050 = vrot.lane.b32.xlu0 %v975, 16
        %v1051 = vpop.permute.xlu0 %1050
        %1052 = vrot.lane.b32.xlu0 %v977, 16
        %v1053 = vpop.permute.xlu0 %1052
        %1054 = vrot.lane.b32.xlu0 %v979, 16
        %v1055 = vpop.permute.xlu0 %1054
        %1056 = vrot.lane.b32.xlu0 %v981, 16
        %v1057 = vpop.permute.xlu0 %1056
        %1058 = vrot.lane.b32.xlu0 %v983, 16
        %v1059 = vpop.permute.xlu0 %1058
        %1060 = vrot.lane.b32.xlu0 %v985, 16
        %v1061 = vpop.permute.xlu0 %1060
        %1062 = vrot.lane.b32.xlu0 %v987, 16
        %v1063 = vpop.permute.xlu0 %1062
        %1064 = vrot.lane.b32.xlu0 %v903, 16
        %v1065 = vpop.permute.xlu0 %1064
        %1066 = vrot.lane.b32.xlu0 %v905, 16
        %v1067 = vpop.permute.xlu0 %1066
        %1068 = vrot.lane.b32.xlu0 %v907, 16
        %v1069 = vpop.permute.xlu0 %1068
        %1070 = vrot.lane.b32.xlu0 %v909, 16
        %v1071 = vpop.permute.xlu0 %1070
        %1072 = vrot.lane.b32.xlu0 %v911, 16
        %v1073 = vpop.permute.xlu0 %1072
        %1074 = vrot.lane.b32.xlu0 %v913, 16
        %v1075 = vpop.permute.xlu0 %1074
        %1076 = vrot.lane.b32.xlu0 %v915, 16
        %v1077 = vpop.permute.xlu0 %1076
        %1078 = vrot.lane.b32.xlu0 %v917, 16
        %v1079 = vpop.permute.xlu0 %1078
        %1080 = vrot.lane.b32.xlu0 %v805, 16
        %v1081 = vpop.permute.xlu0 %1080
        %1082 = vrot.lane.b32.xlu0 %v807, 16
        %v1083 = vpop.permute.xlu0 %1082
        %1084 = vrot.lane.b32.xlu0 %v809, 16
        %v1085 = vpop.permute.xlu0 %1084
        %1086 = vrot.lane.b32.xlu0 %v811, 16
        %v1087 = vpop.permute.xlu0 %1086
        %1088 = vrot.lane.b32.xlu0 %v813, 16
        %v1089 = vpop.permute.xlu0 %1088
        %1090 = vrot.lane.b32.xlu0 %v815, 16
        %v1091 = vpop.permute.xlu0 %1090
        %1092 = vrot.lane.b32.xlu0 %v817, 16
        %v1093 = vpop.permute.xlu0 %1092
        %1094 = vrot.lane.b32.xlu0 %v819, 16
        %v1095 = vpop.permute.xlu0 %1094
        %1096 = vrot.lane.b32.xlu0 %v974, 16
        %v1097 = vpop.permute.xlu0 %1096
        %1098 = vrot.lane.b32.xlu0 %v976, 16
        %v1099 = vpop.permute.xlu0 %1098
        %1100 = vrot.lane.b32.xlu0 %v978, 16
        %v1101 = vpop.permute.xlu0 %1100
        %1102 = vrot.lane.b32.xlu0 %v980, 16
        %v1103 = vpop.permute.xlu0 %1102
        %1104 = vrot.lane.b32.xlu0 %v982, 16
        %v1105 = vpop.permute.xlu0 %1104
        %1106 = vrot.lane.b32.xlu0 %v984, 16
        %v1107 = vpop.permute.xlu0 %1106
        %1108 = vrot.lane.b32.xlu0 %v986, 16
        %v1109 = vpop.permute.xlu0 %1108
        %1110 = vrot.lane.b32.xlu0 %v988, 16
        %v1111 = vpop.permute.xlu0 %1110
        %vm1112 = vcmp.lt.s32.totalorder %v821, 16
        %v1113 = vsel %vm1112, %v1017, %v1065
        %v1114 = vsel %vm1112, %v1019, %v1067
        %v1115 = vsel %vm1112, %v1021, %v1069
        %v1116 = vsel %vm1112, %v1023, %v1071
        %v1117 = vsel %vm1112, %v1025, %v1073
        %v1118 = vsel %vm1112, %v1027, %v1075
        %v1119 = vsel %vm1112, %v1029, %v1077
        %v1120 = vsel %vm1112, %v1031, %v1079
        %v1121 = vsel %vm1112, %v1033, %v1081
        %v1122 = vsel %vm1112, %v1035, %v1083
        %v1123 = vsel %vm1112, %v1037, %v1085
        %v1124 = vsel %vm1112, %v1039, %v1087
        %v1125 = vsel %vm1112, %v1041, %v1089
        %v1126 = vsel %vm1112, %v1043, %v1091
        %v1127 = vsel %vm1112, %v1045, %v1093
        %v1128 = vsel %vm1112, %v1047, %v1095
        %v1129 = vsel %vm1112, %v1049, %v1097
        %v1130 = vsel %vm1112, %v1051, %v1099
        %v1131 = vsel %vm1112, %v1053, %v1101
        %v1132 = vsel %vm1112, %v1055, %v1103
        %v1133 = vsel %vm1112, %v1057, %v1105
        %v1134 = vsel %vm1112, %v1059, %v1107
        %v1135 = vsel %vm1112, %v1061, %v1109
        %v1136 = vsel %vm1112, %v1063, %v1111
        %v1137 = vsel %vm1112, %v1065, %v1017
        %v1138 = vsel %vm1112, %v1067, %v1019
        %v1139 = vsel %vm1112, %v1069, %v1021
        %v1140 = vsel %vm1112, %v1071, %v1023
        %v1141 = vsel %vm1112, %v1073, %v1025
        %v1142 = vsel %vm1112, %v1075, %v1027
        %v1143 = vsel %vm1112, %v1077, %v1029
        %v1144 = vsel %vm1112, %v1079, %v1031
        %v1145 = vsel %vm1112, %v1081, %v1033
        %v1146 = vsel %vm1112, %v1083, %v1035
        %v1147 = vsel %vm1112, %v1085, %v1037
        %v1148 = vsel %vm1112, %v1087, %v1039
        %v1149 = vsel %vm1112, %v1089, %v1041
        %v1150 = vsel %vm1112, %v1091, %v1043
        %v1151 = vsel %vm1112, %v1093, %v1045
        %v1152 = vsel %vm1112, %v1095, %v1047
        %v1153 = vsel %vm1112, %v1097, %v1049
        %v1154 = vsel %vm1112, %v1099, %v1051
        %v1155 = vsel %vm1112, %v1101, %v1053
        %v1156 = vsel %vm1112, %v1103, %v1055
        %v1157 = vsel %vm1112, %v1105, %v1057
        %v1158 = vsel %vm1112, %v1107, %v1059
        %v1159 = vsel %vm1112, %v1109, %v1061
        %v1160 = vsel %vm1112, %v1111, %v1063
        %v1161 = vpack.c.bf16 %v1138, %v1137
        %v1162 = vpack.c.bf16 %v1114, %v1113
        %v1163 = vpack.c.bf16 %v1140, %v1139
        %v1164 = vpack.c.bf16 %v1116, %v1115
        %v1165 = vpack.c.bf16 %v1142, %v1141
        %v1166 = vpack.c.bf16 %v1118, %v1117
        %v1167 = vpack.c.bf16 %v1144, %v1143
        %v1168 = vpack.c.bf16 %v1120, %v1119
        %v1169 = vpack.c.bf16 %v1146, %v1145
        %v1170 = vpack.c.bf16 %v1122, %v1121
        %v1171 = vpack.c.bf16 %v1148, %v1147
        %v1172 = vpack.c.bf16 %v1124, %v1123
        %v1173 = vpack.c.bf16 %v1150, %v1149
        %v1174 = vpack.c.bf16 %v1126, %v1125
        %v1175 = vpack.c.bf16 %v1152, %v1151
        %v1176 = vpack.c.bf16 %v1128, %v1127
        %v1177 = vpack.c.bf16 %v1154, %v1153
        %v1178 = vpack.c.bf16 %v1130, %v1129
        %v1179 = vpack.c.bf16 %v1156, %v1155
        %v1180 = vpack.c.bf16 %v1132, %v1131
        %v1181 = vpack.c.bf16 %v1158, %v1157
        %v1182 = vpack.c.bf16 %v1134, %v1133
        %v1183 = vpack.c.bf16 %v1160, %v1159
        %v1184 = vpack.c.bf16 %v1136, %v1135
        %1186 = vst [vmem:[#allocation1] ss:$4 sm:$0xff] %v1015
        %v1187 = vld.sshfl [vmem:[#allocation1] sm:$0xff pattern:$0x73625140]
        %v1188 = vld.sshfl [vmem:[#allocation1 + $0x8] sm:$0xff pattern:$0x73625140]
        %v1190 = vsel %vm361, %v1188, 0
        %1192 = vmatpush.bf16.msra.mxu0 %v1175
        %1193 = vmatpush.bf16.msra.mxu0 %v1173
        %1194 = vmatpush.bf16.msra.mxu0 %v1171
        %1195 = vmatpush.bf16.msra.mxu0 %v1169
        %1196 = vmatpush.bf16.msra.mxu0 %v1167
        %1197 = vmatpush.bf16.msra.mxu0 %v1165
        %1198 = vmatpush.bf16.msra.mxu0 %v1163
        %1199 = vmatpush.bf16.msra.mxu0 %v1161
        %1200 = vmatmul.bf16.gmra.mxu0 %v1187
        %v1201 = vpop.f32.mrf.mxu0
        %v1202 = vadd.f32 0.0, %v1201
        %v1203 = vpop.f32.mrf.mxu0
        %1204 = vdwg.mxu0
        %1205 = vmatpush.bf16.msra.mxu0 0
        %1206 = vmatpush.bf16.msra.mxu0 0
        %1207 = vmatpush.bf16.msra.mxu0 0
        %1208 = vmatpush.bf16.msra.mxu0 0
        %1209 = vmatpush.bf16.msra.mxu0 %v1183
        %1210 = vmatpush.bf16.msra.mxu0 %v1181
        %1211 = vmatpush.bf16.msra.mxu0 %v1179
        %1212 = vmatpush.bf16.msra.mxu0 %v1177
        %1213 = vmatmul.bf16.gmra.mxu0 %v1190
        %v1214 = vpop.f32.mrf.mxu0
        %v1215 = vadd.f32 %v1202, %v1214
        %v1216 = vpop.f32.mrf.mxu0
        %1217 = vdwg.mxu0
        %1218 = vmatpush.bf16.msra.mxu0 %v1176
        %1219 = vmatpush.bf16.msra.mxu0 %v1174
        %1220 = vmatpush.bf16.msra.mxu0 %v1172
        %1221 = vmatpush.bf16.msra.mxu0 %v1170
        %1222 = vmatpush.bf16.msra.mxu0 %v1168
        %1223 = vmatpush.bf16.msra.mxu0 %v1166
        %1224 = vmatpush.bf16.msra.mxu0 %v1164
        %1225 = vmatpush.bf16.msra.mxu0 %v1162
        %1226 = vmatmul.bf16.gmra.mxu0 %v1187
        %v1227 = vpop.f32.mrf.mxu0
        %v1228 = vadd.f32 0.0, %v1227
        %v1229 = vpop.f32.mrf.mxu0
        %1230 = vdwg.mxu0
        %1231 = vmatpush.bf16.msra.mxu0 0
        %1232 = vmatpush.bf16.msra.mxu0 0
        %1233 = vmatpush.bf16.msra.mxu0 0
        %1234 = vmatpush.bf16.msra.mxu0 0
        %1235 = vmatpush.bf16.msra.mxu0 %v1184
        %1236 = vmatpush.bf16.msra.mxu0 %v1182
        %1237 = vmatpush.bf16.msra.mxu0 %v1180
        %1238 = vmatpush.bf16.msra.mxu0 %v1178
        %1239 = vmatmul.bf16.gmra.mxu0 %v1190
        %v1240 = vpop.f32.mrf.mxu0
        %v1241 = vadd.f32 %v1228, %v1240
        %v1242 = vpop.f32.mrf.mxu0
        %1243 = vdwg.mxu0
        %vm1244 = vcmp.ge.s32.totalorder %v821, 16
        %vm1245 = vcmp.ge.s32.totalorder %v822, 16
        %v1246 = vsel %vm1244, 1, 0
        %v1247 = vsel %vm1245, 1, 0
        %vm1248 = vcmp.eq.s32.totalorder %v1246, 1
        %vm1249 = vcmp.eq.s32.totalorder %v1247, 1
        %v1250 = vsel %vm1248, %v1215, 0.0
        %v1251 = vsel %vm1249, %v1241, 0.0
        %1253 = vst [vmem:[#allocation1] ss:$4 sm:$0xff] %v990
        %v1254 = vld.sshfl [vmem:[#allocation1] sm:$0xff pattern:$0x73625140]
        %v1255 = vld.sshfl [vmem:[#allocation1 + $0x8] sm:$0xff pattern:$0x73625140]
        %v1257 = vsel %vm361, %v1255, 0
        %1259 = vmatpush.bf16.msra.mxu0 %v1005
        %1260 = vmatpush.bf16.msra.mxu0 %v1003
        %1261 = vmatpush.bf16.msra.mxu0 %v1001
        %1262 = vmatpush.bf16.msra.mxu0 %v999
        %1263 = vmatpush.bf16.msra.mxu0 %v997
        %1264 = vmatpush.bf16.msra.mxu0 %v995
        %1265 = vmatpush.bf16.msra.mxu0 %v993
        %1266 = vmatpush.bf16.msra.mxu0 %v991
        %1267 = vmatmul.bf16.gmra.mxu0 %v1254
        %v1268 = vpop.f32.mrf.mxu0
        %v1269 = vadd.f32 %v1250, %v1268
        %v1270 = vpop.f32.mrf.mxu0
        %1271 = vdwg.mxu0
        %1272 = vmatpush.bf16.msra.mxu0 0
        %1273 = vmatpush.bf16.msra.mxu0 0
        %1274 = vmatpush.bf16.msra.mxu0 0
        %1275 = vmatpush.bf16.msra.mxu0 0
        %1276 = vmatpush.bf16.msra.mxu0 %v1013
        %1277 = vmatpush.bf16.msra.mxu0 %v1011
        %1278 = vmatpush.bf16.msra.mxu0 %v1009
        %1279 = vmatpush.bf16.msra.mxu0 %v1007
        %1280 = vmatmul.bf16.gmra.mxu0 %v1257
        %v1281 = vpop.f32.mrf.mxu0
        %v1282 = vadd.f32 %v1269, %v1281
        %v1283 = vpop.f32.mrf.mxu0
        %1284 = vdwg.mxu0
        %1285 = vmatpush.bf16.msra.mxu0 %v1006
        %1286 = vmatpush.bf16.msra.mxu0 %v1004
        %1287 = vmatpush.bf16.msra.mxu0 %v1002
        %1288 = vmatpush.bf16.msra.mxu0 %v1000
        %1289 = vmatpush.bf16.msra.mxu0 %v998
        %1290 = vmatpush.bf16.msra.mxu0 %v996
        %1291 = vmatpush.bf16.msra.mxu0 %v994
        %1292 = vmatpush.bf16.msra.mxu0 %v992
        %1293 = vmatmul.bf16.gmra.mxu0 %v1254
        %v1294 = vpop.f32.mrf.mxu0
        %v1295 = vadd.f32 %v1251, %v1294
        %v1296 = vpop.f32.mrf.mxu0
        %1297 = vdwg.mxu0
        %1298 = vmatpush.bf16.msra.mxu0 0
        %1299 = vmatpush.bf16.msra.mxu0 0
        %1300 = vmatpush.bf16.msra.mxu0 0
        %1301 = vmatpush.bf16.msra.mxu0 0
        %1302 = vmatpush.bf16.msra.mxu0 %v1014
        %1303 = vmatpush.bf16.msra.mxu0 %v1012
        %1304 = vmatpush.bf16.msra.mxu0 %v1010
        %1305 = vmatpush.bf16.msra.mxu0 %v1008
        %1306 = vmatmul.bf16.gmra.mxu0 %v1257
        %v1307 = vpop.f32.mrf.mxu0
        %v1308 = vadd.f32 %v1295, %v1307
        %v1309 = vpop.f32.mrf.mxu0
        %1310 = vdwg.mxu0
        %s1311 = scalar_lea.vmem %s4, 8
        %v1312 = vld [vmem:[%s1311] sm:$0xf]
        %1313 = vrot.lane.b32.xlu0 %v902, 112
        %v1314 = vpop.permute.xlu0 %1313
        %1315 = vrot.lane.b32.xlu0 %v904, 112
        %v1316 = vpop.permute.xlu0 %1315
        %1317 = vrot.lane.b32.xlu0 %v906, 112
        %v1318 = vpop.permute.xlu0 %1317
        %1319 = vrot.lane.b32.xlu0 %v908, 112
        %v1320 = vpop.permute.xlu0 %1319
        %1321 = vrot.lane.b32.xlu0 %v910, 112
        %v1322 = vpop.permute.xlu0 %1321
        %1323 = vrot.lane.b32.xlu0 %v912, 112
        %v1324 = vpop.permute.xlu0 %1323
        %1325 = vrot.lane.b32.xlu0 %v914, 112
        %v1326 = vpop.permute.xlu0 %1325
        %1327 = vrot.lane.b32.xlu0 %v916, 112
        %v1328 = vpop.permute.xlu0 %1327
        %1329 = vrot.lane.b32.xlu0 %v804, 112
        %v1330 = vpop.permute.xlu0 %1329
        %1331 = vrot.lane.b32.xlu0 %v806, 112
        %v1332 = vpop.permute.xlu0 %1331
        %1333 = vrot.lane.b32.xlu0 %v808, 112
        %v1334 = vpop.permute.xlu0 %1333
        %1335 = vrot.lane.b32.xlu0 %v810, 112
        %v1336 = vpop.permute.xlu0 %1335
        %1337 = vrot.lane.b32.xlu0 %v812, 112
        %v1338 = vpop.permute.xlu0 %1337
        %1339 = vrot.lane.b32.xlu0 %v814, 112
        %v1340 = vpop.permute.xlu0 %1339
        %1341 = vrot.lane.b32.xlu0 %v816, 112
        %v1342 = vpop.permute.xlu0 %1341
        %1343 = vrot.lane.b32.xlu0 %v818, 112
        %v1344 = vpop.permute.xlu0 %1343
        %1345 = vrot.lane.b32.xlu0 %v973, 112
        %v1346 = vpop.permute.xlu0 %1345
        %1347 = vrot.lane.b32.xlu0 %v975, 112
        %v1348 = vpop.permute.xlu0 %1347
        %1349 = vrot.lane.b32.xlu0 %v977, 112
        %v1350 = vpop.permute.xlu0 %1349
        %1351 = vrot.lane.b32.xlu0 %v979, 112
        %v1352 = vpop.permute.xlu0 %1351
        %1353 = vrot.lane.b32.xlu0 %v981, 112
        %v1354 = vpop.permute.xlu0 %1353
        %1355 = vrot.lane.b32.xlu0 %v983, 112
        %v1356 = vpop.permute.xlu0 %1355
        %1357 = vrot.lane.b32.xlu0 %v985, 112
        %v1358 = vpop.permute.xlu0 %1357
        %1359 = vrot.lane.b32.xlu0 %v987, 112
        %v1360 = vpop.permute.xlu0 %1359
        %1361 = vrot.lane.b32.xlu0 %v903, 112
        %v1362 = vpop.permute.xlu0 %1361
        %1363 = vrot.lane.b32.xlu0 %v905, 112
        %v1364 = vpop.permute.xlu0 %1363
        %1365 = vrot.lane.b32.xlu0 %v907, 112
        %v1366 = vpop.permute.xlu0 %1365
        %1367 = vrot.lane.b32.xlu0 %v909, 112
        %v1368 = vpop.permute.xlu0 %1367
        %1369 = vrot.lane.b32.xlu0 %v911, 112
        %v1370 = vpop.permute.xlu0 %1369
        %1371 = vrot.lane.b32.xlu0 %v913, 112
        %v1372 = vpop.permute.xlu0 %1371
        %1373 = vrot.lane.b32.xlu0 %v915, 112
        %v1374 = vpop.permute.xlu0 %1373
        %1375 = vrot.lane.b32.xlu0 %v917, 112
        %v1376 = vpop.permute.xlu0 %1375
        %1377 = vrot.lane.b32.xlu0 %v805, 112
        %v1378 = vpop.permute.xlu0 %1377
        %1379 = vrot.lane.b32.xlu0 %v807, 112
        %v1380 = vpop.permute.xlu0 %1379
        %1381 = vrot.lane.b32.xlu0 %v809, 112
        %v1382 = vpop.permute.xlu0 %1381
        %1383 = vrot.lane.b32.xlu0 %v811, 112
        %v1384 = vpop.permute.xlu0 %1383
        %1385 = vrot.lane.b32.xlu0 %v813, 112
        %v1386 = vpop.permute.xlu0 %1385
        %1387 = vrot.lane.b32.xlu0 %v815, 112
        %v1388 = vpop.permute.xlu0 %1387
        %1389 = vrot.lane.b32.xlu0 %v817, 112
        %v1390 = vpop.permute.xlu0 %1389
        %1391 = vrot.lane.b32.xlu0 %v819, 112
        %v1392 = vpop.permute.xlu0 %1391
        %1393 = vrot.lane.b32.xlu0 %v974, 112
        %v1394 = vpop.permute.xlu0 %1393
        %1395 = vrot.lane.b32.xlu0 %v976, 112
        %v1396 = vpop.permute.xlu0 %1395
        %1397 = vrot.lane.b32.xlu0 %v978, 112
        %v1398 = vpop.permute.xlu0 %1397
        %1399 = vrot.lane.b32.xlu0 %v980, 112
        %v1400 = vpop.permute.xlu0 %1399
        %1401 = vrot.lane.b32.xlu0 %v982, 112
        %v1402 = vpop.permute.xlu0 %1401
        %1403 = vrot.lane.b32.xlu0 %v984, 112
        %v1404 = vpop.permute.xlu0 %1403
        %1405 = vrot.lane.b32.xlu0 %v986, 112
        %v1406 = vpop.permute.xlu0 %1405
        %1407 = vrot.lane.b32.xlu0 %v988, 112
        %v1408 = vpop.permute.xlu0 %1407
        %vm1409 = vcmp.lt.s32.totalorder %v821, 112
        %v1410 = vsel %vm1409, %v1314, %v1362
        %v1411 = vsel %vm1409, %v1316, %v1364
        %v1412 = vsel %vm1409, %v1318, %v1366
        %v1413 = vsel %vm1409, %v1320, %v1368
        %v1414 = vsel %vm1409, %v1322, %v1370
        %v1415 = vsel %vm1409, %v1324, %v1372
        %v1416 = vsel %vm1409, %v1326, %v1374
        %v1417 = vsel %vm1409, %v1328, %v1376
        %v1418 = vsel %vm1409, %v1330, %v1378
        %v1419 = vsel %vm1409, %v1332, %v1380
        %v1420 = vsel %vm1409, %v1334, %v1382
        %v1421 = vsel %vm1409, %v1336, %v1384
        %v1422 = vsel %vm1409, %v1338, %v1386
        %v1423 = vsel %vm1409, %v1340, %v1388
        %v1424 = vsel %vm1409, %v1342, %v1390
        %v1425 = vsel %vm1409, %v1344, %v1392
        %v1426 = vsel %vm1409, %v1346, %v1394
        %v1427 = vsel %vm1409, %v1348, %v1396
        %v1428 = vsel %vm1409, %v1350, %v1398
        %v1429 = vsel %vm1409, %v1352, %v1400
        %v1430 = vsel %vm1409, %v1354, %v1402
        %v1431 = vsel %vm1409, %v1356, %v1404
        %v1432 = vsel %vm1409, %v1358, %v1406
        %v1433 = vsel %vm1409, %v1360, %v1408
        %v1434 = vsel %vm1409, %v1362, %v1314
        %v1435 = vsel %vm1409, %v1364, %v1316
        %v1436 = vsel %vm1409, %v1366, %v1318
        %v1437 = vsel %vm1409, %v1368, %v1320
        %v1438 = vsel %vm1409, %v1370, %v1322
        %v1439 = vsel %vm1409, %v1372, %v1324
        %v1440 = vsel %vm1409, %v1374, %v1326
        %v1441 = vsel %vm1409, %v1376, %v1328
        %v1442 = vsel %vm1409, %v1378, %v1330
        %v1443 = vsel %vm1409, %v1380, %v1332
        %v1444 = vsel %vm1409, %v1382, %v1334
        %v1445 = vsel %vm1409, %v1384, %v1336
        %v1446 = vsel %vm1409, %v1386, %v1338
        %v1447 = vsel %vm1409, %v1388, %v1340
        %v1448 = vsel %vm1409, %v1390, %v1342
        %v1449 = vsel %vm1409, %v1392, %v1344
        %v1450 = vsel %vm1409, %v1394, %v1346
        %v1451 = vsel %vm1409, %v1396, %v1348
        %v1452 = vsel %vm1409, %v1398, %v1350
        %v1453 = vsel %vm1409, %v1400, %v1352
        %v1454 = vsel %vm1409, %v1402, %v1354
        %v1455 = vsel %vm1409, %v1404, %v1356
        %v1456 = vsel %vm1409, %v1406, %v1358
        %v1457 = vsel %vm1409, %v1408, %v1360
        %v1458 = vpack.c.bf16 %v1411, %v1410
        %v1459 = vpack.c.bf16 %v1435, %v1434
        %v1460 = vpack.c.bf16 %v1413, %v1412
        %v1461 = vpack.c.bf16 %v1437, %v1436
        %v1462 = vpack.c.bf16 %v1415, %v1414
        %v1463 = vpack.c.bf16 %v1439, %v1438
        %v1464 = vpack.c.bf16 %v1417, %v1416
        %v1465 = vpack.c.bf16 %v1441, %v1440
        %v1466 = vpack.c.bf16 %v1419, %v1418
        %v1467 = vpack.c.bf16 %v1443, %v1442
        %v1468 = vpack.c.bf16 %v1421, %v1420
        %v1469 = vpack.c.bf16 %v1445, %v1444
        %v1470 = vpack.c.bf16 %v1423, %v1422
        %v1471 = vpack.c.bf16 %v1447, %v1446
        %v1472 = vpack.c.bf16 %v1425, %v1424
        %v1473 = vpack.c.bf16 %v1449, %v1448
        %v1474 = vpack.c.bf16 %v1427, %v1426
        %v1475 = vpack.c.bf16 %v1451, %v1450
        %v1476 = vpack.c.bf16 %v1429, %v1428
        %v1477 = vpack.c.bf16 %v1453, %v1452
        %v1478 = vpack.c.bf16 %v1431, %v1430
        %v1479 = vpack.c.bf16 %v1455, %v1454
        %v1480 = vpack.c.bf16 %v1433, %v1432
        %v1481 = vpack.c.bf16 %v1457, %v1456
        %1483 = vst [vmem:[#allocation1] ss:$4 sm:$0xff] %v1312
        %v1484 = vld.sshfl [vmem:[#allocation1] sm:$0xff pattern:$0x73625140]
        %v1485 = vld.sshfl [vmem:[#allocation1 + $0x8] sm:$0xff pattern:$0x73625140]
        %v1487 = vsel %vm361, %v1485, 0
        %1489 = vmatpush.bf16.msra.mxu0 %v1472
        %1490 = vmatpush.bf16.msra.mxu0 %v1470
        %1491 = vmatpush.bf16.msra.mxu0 %v1468
        %1492 = vmatpush.bf16.msra.mxu0 %v1466
        %1493 = vmatpush.bf16.msra.mxu0 %v1464
        %1494 = vmatpush.bf16.msra.mxu0 %v1462
        %1495 = vmatpush.bf16.msra.mxu0 %v1460
        %1496 = vmatpush.bf16.msra.mxu0 %v1458
        %1497 = vmatmul.bf16.gmra.mxu0 %v1484
        %v1498 = vpop.f32.mrf.mxu0
        %v1499 = vadd.f32 0.0, %v1498
        %v1500 = vpop.f32.mrf.mxu0
        %1501 = vdwg.mxu0
        %1502 = vmatpush.bf16.msra.mxu0 0
        %1503 = vmatpush.bf16.msra.mxu0 0
        %1504 = vmatpush.bf16.msra.mxu0 0
        %1505 = vmatpush.bf16.msra.mxu0 0
        %1506 = vmatpush.bf16.msra.mxu0 %v1480
        %1507 = vmatpush.bf16.msra.mxu0 %v1478
        %1508 = vmatpush.bf16.msra.mxu0 %v1476
        %1509 = vmatpush.bf16.msra.mxu0 %v1474
        %1510 = vmatmul.bf16.gmra.mxu0 %v1487
        %v1511 = vpop.f32.mrf.mxu0
        %v1512 = vadd.f32 %v1499, %v1511
        %v1513 = vpop.f32.mrf.mxu0
        %1514 = vdwg.mxu0
        %1515 = vmatpush.bf16.msra.mxu0 %v1473
        %1516 = vmatpush.bf16.msra.mxu0 %v1471
        %1517 = vmatpush.bf16.msra.mxu0 %v1469
        %1518 = vmatpush.bf16.msra.mxu0 %v1467
        %1519 = vmatpush.bf16.msra.mxu0 %v1465
        %1520 = vmatpush.bf16.msra.mxu0 %v1463
        %1521 = vmatpush.bf16.msra.mxu0 %v1461
        %1522 = vmatpush.bf16.msra.mxu0 %v1459
        %1523 = vmatmul.bf16.gmra.mxu0 %v1484
        %v1524 = vpop.f32.mrf.mxu0
        %v1525 = vadd.f32 0.0, %v1524
        %v1526 = vpop.f32.mrf.mxu0
        %1527 = vdwg.mxu0
        %1528 = vmatpush.bf16.msra.mxu0 0
        %1529 = vmatpush.bf16.msra.mxu0 0
        %1530 = vmatpush.bf16.msra.mxu0 0
        %1531 = vmatpush.bf16.msra.mxu0 0
        %1532 = vmatpush.bf16.msra.mxu0 %v1481
        %1533 = vmatpush.bf16.msra.mxu0 %v1479
        %1534 = vmatpush.bf16.msra.mxu0 %v1477
        %1535 = vmatpush.bf16.msra.mxu0 %v1475
        %1536 = vmatmul.bf16.gmra.mxu0 %v1487
        %v1537 = vpop.f32.mrf.mxu0
        %v1538 = vadd.f32 %v1525, %v1537
        %v1539 = vpop.f32.mrf.mxu0
        %1540 = vdwg.mxu0
        %vm1541 = vcmp.lt.s32.totalorder %v821, 240
        %vm1542 = vcmp.lt.s32.totalorder %v822, 240
        %v1543 = vsel %vm1541, 1, 0
        %v1544 = vsel %vm1542, 1, 0
        %vm1545 = vcmp.eq.s32.totalorder %v1543, 1
        %vm1546 = vcmp.eq.s32.totalorder %v1544, 1
        %v1547 = vsel %vm1545, %v1512, 0.0
        %v1548 = vsel %vm1546, %v1538, 0.0
        %v1549 = vadd.f32 %v1282, %v1547
        %v1550 = vadd.f32 %v1308, %v1548
        %v1551 = vld [vmem:[%s5] sm:$0xf]
        %1553 = vset.pattern.permute.xlu0 0
        %1554 = vperm.xlu0 %1553, %v1551
        %v1555 = vpop.permute.xlu0 %1554
        %v1557 = vadd.f32 %v1549, %v1555
        %v1558 = vadd.f32 %v1550, %v1555
        %v1561 = vrot.slane %v1558, 4
        %vm1562 = vcmask 1043456
        %v1563 = vsel %vm1562, %v1557, %v1561
        %1565 = vst [vmem:[%s271] sm:$0xff] %v1563
        %s1566 = sand.u32 %s162, 1
        %s1567 = scalar_lea.sflag [#allocation4], %s1566
        %s1568 = sand.u32 %s162, 1
        %s1569 = smul.addr %s1568, 8
        %s1570 = scalar_lea.vmem [#allocation5], %s1569
        // Predicated region
        $region49: #{tpu_custom_call.1} parent=43 // pred_check
          %p1571 = pneg %p172
        $region50: #{tpu_custom_call.1} parent=43 // pred_check_branch
          %1573 = sbr.rel (%p1571) target = $region52
        $region51: #{tpu_custom_call.1} parent=43 // pred_region
          %1575 = vsyncadd %s1567, 0
          %s1576 = smul.addr %s23, 2
          %s1577 = smul.addr %s1576, 4
          %s1578 = scalar_lea.hbm %s6, %s1577
          %s1580 = sshll.u32 %s1570, 4
          %s1581 = int_to_ptr.vmem [resolvable:$true] %s1580
          %s1582 = sshll.u32 %s1578, 4
          %s1583 = int_to_ptr.hbm [resolvable:$true] %s1582
          %1585 = dma.vmem_to_hbm [thread:$0]  %s1581, 128, %s1583, %s1567
        $region52: #{tpu_custom_call.1} parent=43 // pred_fallthru
          _
      $region44: #{tpu_custom_call.1} parent=5 // pred_fallthru
        _
      %p1586 = scmp.le.s32.totalorder 2, %s18
      // Predicated region
      $region53: #{tpu_custom_call.1} parent=5 // pred_check
        %p1587 = pneg %p1586
      $region54: #{tpu_custom_call.1} parent=5 // pred_check_branch
        %1589 = sbr.rel (%p1587) target = $region56
      $region55: #{tpu_custom_call.1} parent=5 // pred_region
        %s1590 = ssub.s32 %s18, 2
        // Predicated region
        $region57: #{tpu_custom_call.1} parent=55 // pred_check
          %p1591 = pneg %p178
        $region58: #{tpu_custom_call.1} parent=55 // pred_check_branch
          %1593 = sbr.rel (%p1591) target = $region60
        $region59: #{tpu_custom_call.1} parent=55 // pred_region
          %s1594 = sand.u32 %s163, 1
          %s1595 = scalar_lea.sflag [#allocation4], %s1594
          %s1596 = sand.u32 %s163, 1
          %s1597 = smul.addr %s1596, 8
          %s1598 = scalar_lea.vmem [#allocation5], %s1597
          %1600 = dma.done %s1595, 128
        $region60: #{tpu_custom_call.1} parent=55 // pred_fallthru
          _
      $region56: #{tpu_custom_call.1} parent=5 // pred_fallthru
        _
    $region6: #{tpu_custom_call.1} parent=1 // loop_footer
      %s22 = sadd.s32 1, %s18
    $region7: #{tpu_custom_call.1} parent=1 // loop_footer_branch
      %17 = sbr.rel target = $region3
    $region8: #{tpu_custom_call.1} parent=1 // loop_exit
      _
    %1601 = vsyncpa [#allocation3], 1
    %s1602 = scalar_lea.sflag [#allocation3], 1
    %1603 = vsyncpa %s1602, 1
    %1604 = vsyncpa [#allocation4], 1
    %s1605 = scalar_lea.sflag [#allocation4], 1
    %1606 = vsyncpa %s1605, 1

</llo_original>
